<compile_context>
chip_gen: v6e
topology: v6e:2x2x1
jax: 0.10.0
libtpu: 0.0.40
codegen_flags: <defaults>
</compile_context>

<pallas_src>
import functools
import math

import jax
import jax.numpy as jnp
from jax.experimental import pallas as pl
from jax.experimental.pallas import tpu as pltpu


# ---------------------------------------------------------------------------
# Pallas kernel
# ---------------------------------------------------------------------------
def mhr_kernel(xq_ref, xk_ref, wq_ref, bq_ref, wk_ref, bk_ref, wv_ref, bv_ref,
               lng_ref, lnb_ref, wo_ref, bo_ref, o_ref, acc_ref,
               *, n_heads, head_dim, blk, alpha, compute_dtype):
    qi = pl.program_id(1)
    ki = pl.program_id(2)
    nk = pl.num_programs(2)
    inv_sqrt = 1.0 / (float(head_dim) ** 0.5)     # Retention.dim_sqrt (per head)
    dn_proj = (((2,), (1,)), ((0,), (0,)))        # (H,T,hd) x (H,hd,hd) -> (H,T,hd)
    dn_qkt = (((2,), (2,)), ((0,), (0,)))         # (H,TQ,hd) x (H,TK,hd) -> (H,TQ,TK)
    dn_sv = (((2,), (1,)), ((0,), (0,)))          # (H,TQ,TK) x (H,TK,hd) -> (H,TQ,hd)

    @pl.when(ki == 0)
    def _init():
        acc_ref[...] = jnp.zeros_like(acc_ref)

    # Causal tile skip: with equal query/key tile sizes, key tile ki only
    # contributes when ki <= qi (strictly-upper tiles are fully masked).
    @pl.when(ki <= qi)
    def _compute():
        xq = xq_ref[0].astype(compute_dtype)      # (H, TQ, hd)
        xk = xk_ref[0].astype(compute_dtype)      # (H, TK, hd)

        # Head-batched projections (weights already in compute_dtype).
        q = jax.lax.dot_general(xq, wq_ref[...], dn_proj,
                                preferred_element_type=jnp.float32) + bq_ref[...]
        k = jax.lax.dot_general(xk, wk_ref[...], dn_proj,
                                preferred_element_type=jnp.float32) + bk_ref[...]
        v = jax.lax.dot_general(xk, wv_ref[...], dn_proj,
                                preferred_element_type=jnp.float32) + bv_ref[...]

        # Scores (H, TQ, TK) — contraction over head_dim, no materialised k^T.
        s = jax.lax.dot_general(q.astype(compute_dtype), k.astype(compute_dtype),
                                dn_qkt, preferred_element_type=jnp.float32)

        # Retention mask (causal * decay) built in-kernel — no (S,S) HBM DMA.
        rows = qi * blk + jax.lax.broadcasted_iota(jnp.int32, (blk, blk), 0)
        cols = ki * blk + jax.lax.broadcasted_iota(jnp.int32, (blk, blk), 1)
        causal = rows >= cols
        if alpha == 1.0:
            m = causal.astype(jnp.float32)
        else:
            delta = jnp.maximum(rows - cols, 0).astype(jnp.float32)
            m = jnp.where(causal, jnp.exp(delta * math.log(alpha)), 0.0)
        s = s * inv_sqrt * m[None]

        acc_ref[...] += jax.lax.dot_general(
            s.astype(compute_dtype), v.astype(compute_dtype), dn_sv,
            preferred_element_type=jnp.float32)

    # Epilogue on the last key tile: LayerNorm over the concatenated head dim,
    # exact GELU, and the (D, D) output projection into a lane-dense (TQ, D) slab.
    @pl.when(ki == nk - 1)
    def _finalize():
        acc = acc_ref[...]                        # (H, TQ, hd), f32
        inv_n = 1.0 / float(n_heads * head_dim)
        ssum = jnp.sum(jnp.sum(acc, axis=2, keepdims=True), axis=0, keepdims=True)
        mu = ssum * inv_n                         # (1, TQ, 1)
        d = acc - mu
        var = jnp.sum(jnp.sum(d * d, axis=2, keepdims=True),
                      axis=0, keepdims=True) * inv_n
        h = d * jax.lax.rsqrt(var + 1e-5) * lng_ref[...] + lnb_ref[...]
        h = 0.5 * h * (1.0 + jax.lax.erf(h * (1.0 / math.sqrt(2.0))))   # exact GELU
        h = h.astype(compute_dtype)

        wo = wo_ref[...]                          # (H, hd, D), compute_dtype
        out = jnp.zeros((blk, wo.shape[-1]), jnp.float32)
        for i in range(n_heads):                  # lane-dense accumulation, no concat
            out += jnp.dot(h[i], wo[i], preferred_element_type=jnp.float32)
        out = out + bo_ref[...]
        o_ref[0] = out.astype(o_ref.dtype)


# ---------------------------------------------------------------------------
# wrapper
# ---------------------------------------------------------------------------
def multi_head_retention(x, params, *, n_heads, head_dim, blk=None,
                         alpha=1.0, compute_dtype=jnp.bfloat16):
    B, S, D = x.shape
    assert D == n_heads * head_dim
    if blk is None:
        blk = min(S, 256)
    assert S % blk == 0, "sequence length must be a multiple of the tile size"
    nq = S // blk

    # Head-major layout (B, H, S, hd): keeps every in-kernel matmul lane-dense
    # and avoids narrow per-head column slices.  Done once in plain JAX.
    x_h = x.reshape(B, S, n_heads, head_dim).transpose(0, 2, 1, 3)

    cd = compute_dtype
    f32 = jnp.float32
    wq = params["wq"].astype(cd)
    wk = params["wk"].astype(cd)
    wv = params["wv"].astype(cd)
    wo = params["wo"].astype(cd)
    bq = params["bq"].astype(f32)
    bk = params["bk"].astype(f32)
    bv = params["bv"].astype(f32)
    lng = params["ln_g"].astype(f32)
    lnb = params["ln_b"].astype(f32)
    bo = params["bo"].astype(f32)

    kern = functools.partial(mhr_kernel, n_heads=n_heads, head_dim=head_dim,
                             blk=blk, alpha=alpha, compute_dtype=cd)

    def param_spec(shape):
        # Constant index map: fetched once, then the pipeline skips the re-copy.
        n = len(shape)
        return pl.BlockSpec(shape, lambda b, qi, ki: (0,) * n)

    xq_spec = pl.BlockSpec((1, n_heads, blk, head_dim),
                           lambda b, qi, ki: (b, 0, qi, 0))
    # Clamp ki to qi so skipped (fully-masked) key tiles do not fetch new data.
    xk_spec = pl.BlockSpec((1, n_heads, blk, head_dim),
                           lambda b, qi, ki: (b, 0, jnp.minimum(ki, qi), 0))

    in_specs = [
        xq_spec, xk_spec,
        param_spec((n_heads, head_dim, head_dim)),  # wq
        param_spec((n_heads, 1, head_dim)),         # bq
        param_spec((n_heads, head_dim, head_dim)),  # wk
        param_spec((n_heads, 1, head_dim)),         # bk
        param_spec((n_heads, head_dim, head_dim)),  # wv
        param_spec((n_heads, 1, head_dim)),         # bv
        param_spec((n_heads, 1, head_dim)),         # ln gamma
        param_spec((n_heads, 1, head_dim)),         # ln beta
        param_spec((n_heads, head_dim, D)),         # wo
        param_spec((1, D)),                         # bo
    ]

    return pl.pallas_call(
        kern,
        out_shape=jax.ShapeDtypeStruct((B, S, D), x.dtype),
        grid_spec=pltpu.PrefetchScalarGridSpec(
            num_scalar_prefetch=0,
            grid=(B, nq, nq),
            in_specs=in_specs,
            out_specs=pl.BlockSpec((1, blk, D), lambda b, qi, ki: (b, qi, 0)),
            scratch_shapes=[pltpu.VMEM((n_heads, blk, head_dim), jnp.float32)],
        ),
        compiler_params=pltpu.CompilerParams(
            dimension_semantics=("parallel", "parallel", "arbitrary"),
            vmem_limit_bytes=48 * 1024 * 1024,
        ),
    )(x_h, x_h, wq, bq, wk, bk, wv, bv, lng, lnb, wo, bo)


# ---------------------------------------------------------------------------
# pure-JAX reference (mirrors the PyTorch module, parallel mode, eval)
# ---------------------------------------------------------------------------
def multi_head_retention_ref(x, params, *, n_heads, head_dim, alpha=1.0):
    B, S, D = x.shape
    i = jnp.arange(S)[:, None]
    j = jnp.arange(S)[None, :]
    causal = i >= j
    if alpha == 1.0:
        M = causal.astype(jnp.float32)
    else:
        M = jnp.where(causal, jnp.asarray(alpha, jnp.float32) ** (i - j), 0.0)
    inv_sqrt = 1.0 / (float(head_dim) ** 0.5)

    outs = []
    for h in range(n_heads):
        xh = x[:, :, h * head_dim:(h + 1) * head_dim]
        q = xh @ params["wq"][h] + params["bq"][h, 0]
        k = xh @ params["wk"][h] + params["bk"][h, 0]
        v = xh @ params["wv"][h] + params["bv"][h, 0]
        s = jnp.einsum("bqd,bkd->bqk", q, k) * inv_sqrt * M[None]
        outs.append(jnp.einsum("bqk,bkd->bqd", s, v))
    ret = jnp.concatenate(outs, axis=-1)                       # (B, S, D)

    g = params["ln_g"].reshape(-1)
    b = params["ln_b"].reshape(-1)
    mu = ret.mean(-1, keepdims=True)
    var = ((ret - mu) ** 2).mean(-1, keepdims=True)
    ln = (ret - mu) * jax.lax.rsqrt(var + 1e-5) * g + b
    act = 0.5 * ln * (1.0 + jax.lax.erf(ln / math.sqrt(2.0)))
    wo = params["wo"].reshape(D, D)                            # row index = h*hd + d
    return act @ wo + params["bo"][0]


# ---------------------------------------------------------------------------
# deterministic parameter init
# ---------------------------------------------------------------------------
def init_params(key, n_heads, head_dim, D, dtype=jnp.float32):
    ks = jax.random.split(key, 8)
    nrm = lambda k, shape, s=0.1: (s * jax.random.normal(k, shape)).astype(dtype)
    return dict(
        wq=nrm(ks[0], (n_heads, head_dim, head_dim)),
        wk=nrm(ks[1], (n_heads, head_dim, head_dim)),
        wv=nrm(ks[2], (n_heads, head_dim, head_dim)),
        bq=nrm(ks[3], (n_heads, 1, head_dim)),
        bk=nrm(ks[4], (n_heads, 1, head_dim)),
        bv=nrm(ks[5], (n_heads, 1, head_dim)),
        ln_g=jnp.ones((n_heads, 1, head_dim), dtype),
        ln_b=jnp.zeros((n_heads, 1, head_dim), dtype),
        wo=nrm(ks[6], (n_heads, head_dim, D)),
        bo=nrm(ks[7], (1, D)),
    )


if __name__ == "__main__":
    B, S, D, H = 2, 16, 32, 4          # small shapes; 2x2 q/k tile grid per batch
    hd = D // H

    key = jax.random.PRNGKey(0)
    kx, kp = jax.random.split(key)
    x = jax.random.normal(kx, (B, S, D), dtype=jnp.float32)
    params = init_params(kp, H, hd, D)

    ref = multi_head_retention_ref(x, params, n_heads=H, head_dim=hd)

    # f32 compute path: tight numerical check of the kernel logic.
    out32 = multi_head_retention(x, params, n_heads=H, head_dim=hd, blk=8,
                                 compute_dtype=jnp.float32)
    out32 = jax.block_until_ready(out32)
    assert out32.shape == (B, S, D)
    assert jnp.allclose(out32, ref, atol=2e-4, rtol=2e-4), (
        float(jnp.max(jnp.abs(out32 - ref))))

    # bf16 compute path (the performance configuration).
    outbf = multi_head_retention(x, params, n_heads=H, head_dim=hd, blk=8)
    outbf = jax.block_until_ready(outbf)
    assert jnp.allclose(outbf, ref, atol=4e-2, rtol=4e-2), (
        float(jnp.max(jnp.abs(outbf - ref))))

    print("KERNEL_OK")
</pallas_src>

<mosaic_0001>
module attributes {stable_mosaic.version = 11 : i64} {
  func.func @mhr_kernel(%arg0: i32, %arg1: i32, %arg2: i32, %arg3: memref<1x4x8x8xf32, #tpu.memory_space<vmem>>, %arg4: memref<1x4x8x8xf32, #tpu.memory_space<vmem>>, %arg5: memref<4x8x8xf32, #tpu.memory_space<vmem>>, %arg6: memref<4x1x8xf32, #tpu.memory_space<vmem>>, %arg7: memref<4x8x8xf32, #tpu.memory_space<vmem>>, %arg8: memref<4x1x8xf32, #tpu.memory_space<vmem>>, %arg9: memref<4x8x8xf32, #tpu.memory_space<vmem>>, %arg10: memref<4x1x8xf32, #tpu.memory_space<vmem>>, %arg11: memref<4x1x8xf32, #tpu.memory_space<vmem>>, %arg12: memref<4x1x8xf32, #tpu.memory_space<vmem>>, %arg13: memref<4x8x32xf32, #tpu.memory_space<vmem>>, %arg14: memref<1x32xf32, #tpu.memory_space<vmem>>, %arg15: memref<1x8x32xf32, #tpu.memory_space<vmem>>, %arg16: memref<4x8x8xf32, #tpu.memory_space<vmem>>) attributes {dimension_semantics = [#tpu.dimension_semantics<parallel>, #tpu.dimension_semantics<parallel>, #tpu.dimension_semantics<arbitrary>], iteration_bounds = array<i64: 2, 2, 2>, scalar_prefetch = 0 : i64, scratch_operands = 1 : i64, tpu.core_type = #tpu.core_type<tc>, window_params = [{transform_indices = @transform_0, window_bounds = array<i64: 1, 4, 8, 8>}, {transform_indices = @transform_1, window_bounds = array<i64: 1, 4, 8, 8>}, {pipeline_mode = #tpu.pipeline_mode<synchronous>, transform_indices = @transform_2, window_bounds = array<i64: 4, 8, 8>}, {pipeline_mode = #tpu.pipeline_mode<synchronous>, transform_indices = @transform_3, window_bounds = array<i64: 4, 1, 8>}, {pipeline_mode = #tpu.pipeline_mode<synchronous>, transform_indices = @transform_4, window_bounds = array<i64: 4, 8, 8>}, {pipeline_mode = #tpu.pipeline_mode<synchronous>, transform_indices = @transform_5, window_bounds = array<i64: 4, 1, 8>}, {pipeline_mode = #tpu.pipeline_mode<synchronous>, transform_indices = @transform_6, window_bounds = array<i64: 4, 8, 8>}, {pipeline_mode = #tpu.pipeline_mode<synchronous>, transform_indices = @transform_7, window_bounds = array<i64: 4, 1, 8>}, {pipeline_mode = #tpu.pipeline_mode<synchronous>, transform_indices = @transform_8, window_bounds = array<i64: 4, 1, 8>}, {pipeline_mode = #tpu.pipeline_mode<synchronous>, transform_indices = @transform_9, window_bounds = array<i64: 4, 1, 8>}, {pipeline_mode = #tpu.pipeline_mode<synchronous>, transform_indices = @transform_10, window_bounds = array<i64: 4, 8, 32>}, {pipeline_mode = #tpu.pipeline_mode<synchronous>, transform_indices = @transform_11, window_bounds = array<i64: 1, 32>}, {transform_indices = @transform_12, window_bounds = array<i64: 1, 8, 32>}]} {
    %c0_i32 = arith.constant 0 : i32
    %0 = arith.cmpi eq, %arg2, %c0_i32 : i32
    %1 = arith.extui %0 : i1 to i32
    %c0_i32_0 = arith.constant 0 : i32
    %2 = arith.cmpi ne, %1, %c0_i32_0 : i32
    scf.if %2 {
      %cst = arith.constant 0.000000e+00 : f32
      %9 = vector.broadcast %cst : f32 to vector<4x8x8xf32>
      %c0 = arith.constant 0 : index
      %c0_3 = arith.constant 0 : index
      %c0_4 = arith.constant 0 : index
      %10 = vector.load %arg16[%c0, %c0_3, %c0_4] : memref<4x8x8xf32, #tpu.memory_space<vmem>>, vector<4x8x8xf32>
      tpu.vector_store %arg16[%c0, %c0_3, %c0_4], %9 {strides = array<i32>} : memref<4x8x8xf32, #tpu.memory_space<vmem>>, vector<4x8x8xf32>,
    } else {
    }
    %3 = arith.cmpi sle, %arg2, %arg1 : i32
    %4 = arith.extui %3 : i1 to i32
    %c0_i32_1 = arith.constant 0 : i32
    %5 = arith.cmpi ne, %4, %c0_i32_1 : i32
    scf.if %5 {
      %c0 = arith.constant 0 : index
      %c0_3 = arith.constant 0 : index
      %c0_4 = arith.constant 0 : index
      %c0_5 = arith.constant 0 : index
      %9 = vector.load %arg3[%c0, %c0_3, %c0_4, %c0_5] : memref<1x4x8x8xf32, #tpu.memory_space<vmem>>, vector<1x4x8x8xf32>
      %10 = vector.shape_cast %9 : vector<1x4x8x8xf32> to vector<4x8x8xf32>
      %c0_6 = arith.constant 0 : index
      %c0_7 = arith.constant 0 : index
      %c0_8 = arith.constant 0 : index
      %c0_9 = arith.constant 0 : index
      %11 = vector.load %arg4[%c0_6, %c0_7, %c0_8, %c0_9] : memref<1x4x8x8xf32, #tpu.memory_space<vmem>>, vector<1x4x8x8xf32>
      %12 = vector.shape_cast %11 : vector<1x4x8x8xf32> to vector<4x8x8xf32>
      %c0_10 = arith.constant 0 : index
      %c0_11 = arith.constant 0 : index
      %c0_12 = arith.constant 0 : index
      %13 = vector.load %arg5[%c0_10, %c0_11, %c0_12] : memref<4x8x8xf32, #tpu.memory_space<vmem>>, vector<4x8x8xf32>
      %cst = arith.constant dense<0.000000e+00> : vector<4x8x8xf32>
      %14 = tpu.matmul %10, %13, %cst {dimension_numbers = #tpu.dot_dimension_numbers<[2], [1], [1], [2], [0, 0, 0, 1, 1, 2], [0], [0]>} : vector<4x8x8xf32>, vector<4x8x8xf32>, vector<4x8x8xf32> -> vector<4x8x8xf32>
      %c0_13 = arith.constant 0 : index
      %c0_14 = arith.constant 0 : index
      %c0_15 = arith.constant 0 : index
      %15 = vector.load %arg6[%c0_13, %c0_14, %c0_15] : memref<4x1x8xf32, #tpu.memory_space<vmem>>, vector<4x1x8xf32>
      %16 = vector.broadcast %15 : vector<4x1x8xf32> to vector<4x8x8xf32>
      %17 = arith.addf %14, %16 : vector<4x8x8xf32>
      %c0_16 = arith.constant 0 : index
      %c0_17 = arith.constant 0 : index
      %c0_18 = arith.constant 0 : index
      %18 = vector.load %arg7[%c0_16, %c0_17, %c0_18] : memref<4x8x8xf32, #tpu.memory_space<vmem>>, vector<4x8x8xf32>
      %cst_19 = arith.constant dense<0.000000e+00> : vector<4x8x8xf32>
      %19 = tpu.matmul %12, %18, %cst_19 {dimension_numbers = #tpu.dot_dimension_numbers<[2], [1], [1], [2], [0, 0, 0, 1, 1, 2], [0], [0]>} : vector<4x8x8xf32>, vector<4x8x8xf32>, vector<4x8x8xf32> -> vector<4x8x8xf32>
      %c0_20 = arith.constant 0 : index
      %c0_21 = arith.constant 0 : index
      %c0_22 = arith.constant 0 : index
      %20 = vector.load %arg8[%c0_20, %c0_21, %c0_22] : memref<4x1x8xf32, #tpu.memory_space<vmem>>, vector<4x1x8xf32>
      %21 = vector.broadcast %20 : vector<4x1x8xf32> to vector<4x8x8xf32>
      %22 = arith.addf %19, %21 : vector<4x8x8xf32>
      %c0_23 = arith.constant 0 : index
      %c0_24 = arith.constant 0 : index
      %c0_25 = arith.constant 0 : index
      %23 = vector.load %arg9[%c0_23, %c0_24, %c0_25] : memref<4x8x8xf32, #tpu.memory_space<vmem>>, vector<4x8x8xf32>
      %cst_26 = arith.constant dense<0.000000e+00> : vector<4x8x8xf32>
      %24 = tpu.matmul %12, %23, %cst_26 {dimension_numbers = #tpu.dot_dimension_numbers<[2], [1], [1], [2], [0, 0, 0, 1, 1, 2], [0], [0]>} : vector<4x8x8xf32>, vector<4x8x8xf32>, vector<4x8x8xf32> -> vector<4x8x8xf32>
      %c0_27 = arith.constant 0 : index
      %c0_28 = arith.constant 0 : index
      %c0_29 = arith.constant 0 : index
      %25 = vector.load %arg10[%c0_27, %c0_28, %c0_29] : memref<4x1x8xf32, #tpu.memory_space<vmem>>, vector<4x1x8xf32>
      %26 = vector.broadcast %25 : vector<4x1x8xf32> to vector<4x8x8xf32>
      %27 = arith.addf %24, %26 : vector<4x8x8xf32>
      %cst_30 = arith.constant dense<0.000000e+00> : vector<4x8x8xf32>
      %28 = tpu.matmul %17, %22, %cst_30 {dimension_numbers = #tpu.dot_dimension_numbers<[2], [2], [1], [1], [0, 0, 0, 1, 1, 1], [0], [0]>} : vector<4x8x8xf32>, vector<4x8x8xf32>, vector<4x8x8xf32> -> vector<4x8x8xf32>
      %c8_i32 = arith.constant 8 : i32
      %29 = arith.muli %arg1, %c8_i32 : i32
      %30 = tpu.iota {dimensions = array<i32: 0>} : vector<8x8xi32>
      %31 = vector.broadcast %29 : i32 to vector<8x8xi32>
      %32 = arith.addi %31, %30 : vector<8x8xi32>
      %c8_i32_31 = arith.constant 8 : i32
      %33 = arith.muli %arg2, %c8_i32_31 : i32
      %34 = tpu.iota {dimensions = array<i32: 1>} : vector<8x8xi32>
      %35 = vector.broadcast %33 : i32 to vector<8x8xi32>
      %36 = arith.addi %35, %34 : vector<8x8xi32>
      %37 = arith.cmpi sge, %32, %36 : vector<8x8xi32>
      %38 = arith.extui %37 : vector<8x8xi1> to vector<8x8xi32>
      %39 = arith.sitofp %38 : vector<8x8xi32> to vector<8x8xf32>
      %cst_32 = arith.constant 0.353553385 : f32
      %40 = vector.broadcast %cst_32 : f32 to vector<4x8x8xf32>
      %41 = arith.mulf %28, %40 : vector<4x8x8xf32>
      %42 = vector.shape_cast %39 : vector<8x8xf32> to vector<1x8x8xf32>
      %43 = vector.broadcast %42 : vector<1x8x8xf32> to vector<4x8x8xf32>
      %44 = arith.mulf %41, %43 : vector<4x8x8xf32>
      %c0_33 = arith.constant 0 : index
      %c0_34 = arith.constant 0 : index
      %c0_35 = arith.constant 0 : index
      %45 = vector.load %arg16[%c0_33, %c0_34, %c0_35] : memref<4x8x8xf32, #tpu.memory_space<vmem>>, vector<4x8x8xf32>
      %cst_36 = arith.constant dense<0.000000e+00> : vector<4x8x8xf32>
      %46 = tpu.matmul %44, %27, %cst_36 {dimension_numbers = #tpu.dot_dimension_numbers<[2], [1], [1], [2], [0, 0, 0, 1, 1, 2], [0], [0]>} : vector<4x8x8xf32>, vector<4x8x8xf32>, vector<4x8x8xf32> -> vector<4x8x8xf32>
      %47 = arith.addf %45, %46 : vector<4x8x8xf32>
      %c0_37 = arith.constant 0 : index
      %c0_38 = arith.constant 0 : index
      %c0_39 = arith.constant 0 : index
      %48 = vector.load %arg16[%c0_37, %c0_38, %c0_39] : memref<4x8x8xf32, #tpu.memory_space<vmem>>, vector<4x8x8xf32>
      tpu.vector_store %arg16[%c0_37, %c0_38, %c0_39], %47 {strides = array<i32>} : memref<4x8x8xf32, #tpu.memory_space<vmem>>, vector<4x8x8xf32>,
    } else {
    }
    %c1_i32 = arith.constant 1 : i32
    %6 = arith.cmpi eq, %arg2, %c1_i32 : i32
    %7 = arith.extui %6 : i1 to i32
    %c0_i32_2 = arith.constant 0 : i32
    %8 = arith.cmpi ne, %7, %c0_i32_2 : i32
    scf.if %8 {
      %c0 = arith.constant 0 : index
      %c0_3 = arith.constant 0 : index
      %c0_4 = arith.constant 0 : index
      %9 = vector.load %arg16[%c0, %c0_3, %c0_4] : memref<4x8x8xf32, #tpu.memory_space<vmem>>, vector<4x8x8xf32>
      %cst = arith.constant dense<0.000000e+00> : vector<4x8xf32>
      %10 = vector.multi_reduction <add>, %9, %cst [2] : vector<4x8x8xf32> to vector<4x8xf32>
      %11 = vector.shape_cast %10 : vector<4x8xf32> to vector<4x8x1xf32>
      %cst_5 = arith.constant dense<0.000000e+00> : vector<8x1xf32>
      %12 = vector.multi_reduction <add>, %11, %cst_5 [0] : vector<4x8x1xf32> to vector<8x1xf32>
      %13 = vector.shape_cast %12 : vector<8x1xf32> to vector<1x8x1xf32>
      %cst_6 = arith.constant 3.125000e-02 : f32
      %14 = vector.broadcast %cst_6 : f32 to vector<1x8x1xf32>
      %15 = arith.mulf %13, %14 : vector<1x8x1xf32>
      %16 = vector.broadcast %15 : vector<1x8x1xf32> to vector<4x8x8xf32>
      %17 = arith.subf %9, %16 : vector<4x8x8xf32>
      %18 = arith.mulf %17, %17 : vector<4x8x8xf32>
      %cst_7 = arith.constant dense<0.000000e+00> : vector<4x8xf32>
      %19 = vector.multi_reduction <add>, %18, %cst_7 [2] : vector<4x8x8xf32> to vector<4x8xf32>
      %20 = vector.shape_cast %19 : vector<4x8xf32> to vector<4x8x1xf32>
      %cst_8 = arith.constant dense<0.000000e+00> : vector<8x1xf32>
      %21 = vector.multi_reduction <add>, %20, %cst_8 [0] : vector<4x8x1xf32> to vector<8x1xf32>
      %22 = vector.shape_cast %21 : vector<8x1xf32> to vector<1x8x1xf32>
      %cst_9 = arith.constant 3.125000e-02 : f32
      %23 = vector.broadcast %cst_9 : f32 to vector<1x8x1xf32>
      %24 = arith.mulf %22, %23 : vector<1x8x1xf32>
      %cst_10 = arith.constant 9.99999974E-6 : f32
      %25 = vector.broadcast %cst_10 : f32 to vector<1x8x1xf32>
      %26 = arith.addf %24, %25 : vector<1x8x1xf32>
      %27 = math.rsqrt %26 : vector<1x8x1xf32>
      %28 = vector.broadcast %27 : vector<1x8x1xf32> to vector<4x8x8xf32>
      %29 = arith.mulf %17, %28 : vector<4x8x8xf32>
      %c0_11 = arith.constant 0 : index
      %c0_12 = arith.constant 0 : index
      %c0_13 = arith.constant 0 : index
      %30 = vector.load %arg11[%c0_11, %c0_12, %c0_13] : memref<4x1x8xf32, #tpu.memory_space<vmem>>, vector<4x1x8xf32>
      %31 = vector.broadcast %30 : vector<4x1x8xf32> to vector<4x8x8xf32>
      %32 = arith.mulf %29, %31 : vector<4x8x8xf32>
      %c0_14 = arith.constant 0 : index
      %c0_15 = arith.constant 0 : index
      %c0_16 = arith.constant 0 : index
      %33 = vector.load %arg12[%c0_14, %c0_15, %c0_16] : memref<4x1x8xf32, #tpu.memory_space<vmem>>, vector<4x1x8xf32>
      %34 = vector.broadcast %33 : vector<4x1x8xf32> to vector<4x8x8xf32>
      %35 = arith.addf %32, %34 : vector<4x8x8xf32>
      %cst_17 = arith.constant 5.000000e-01 : f32
      %36 = vector.broadcast %cst_17 : f32 to vector<4x8x8xf32>
      %37 = arith.mulf %36, %35 : vector<4x8x8xf32>
      %cst_18 = arith.constant 0.707106769 : f32
      %38 = vector.broadcast %cst_18 : f32 to vector<4x8x8xf32>
      %39 = arith.mulf %35, %38 : vector<4x8x8xf32>
      %40 = math.erf %39 : vector<4x8x8xf32>
      %cst_19 = arith.constant 1.000000e+00 : f32
      %41 = vector.broadcast %cst_19 : f32 to vector<4x8x8xf32>
      %42 = arith.addf %41, %40 : vector<4x8x8xf32>
      %43 = arith.mulf %37, %42 : vector<4x8x8xf32>
      %c0_20 = arith.constant 0 : index
      %c0_21 = arith.constant 0 : index
      %c0_22 = arith.constant 0 : index
      %44 = vector.load %arg13[%c0_20, %c0_21, %c0_22] : memref<4x8x32xf32, #tpu.memory_space<vmem>>, vector<4x8x32xf32>
      %cst_23 = arith.constant 0.000000e+00 : f32
      %45 = vector.broadcast %cst_23 : f32 to vector<8x32xf32>
      %46 = vector.extract_strided_slice %43 {offsets = [0, 0, 0], sizes = [1, 8, 8], strides = [1, 1, 1]} : vector<4x8x8xf32> to vector<1x8x8xf32>
      %47 = vector.shape_cast %46 : vector<1x8x8xf32> to vector<8x8xf32>
      %48 = vector.extract_strided_slice %44 {offsets = [0, 0, 0], sizes = [1, 8, 32], strides = [1, 1, 1]} : vector<4x8x32xf32> to vector<1x8x32xf32>
      %49 = vector.shape_cast %48 : vector<1x8x32xf32> to vector<8x32xf32>
      %cst_24 = arith.constant dense<0.000000e+00> : vector<8x32xf32>
      %50 = tpu.matmul %47, %49, %cst_24 {dimension_numbers = #tpu.dot_dimension_numbers<[1], [0], [0], [1], [0, 0, 1, 1], [], []>} : vector<8x8xf32>, vector<8x32xf32>, vector<8x32xf32> -> vector<8x32xf32>
      %51 = arith.addf %45, %50 : vector<8x32xf32>
      %52 = vector.extract_strided_slice %43 {offsets = [1, 0, 0], sizes = [1, 8, 8], strides = [1, 1, 1]} : vector<4x8x8xf32> to vector<1x8x8xf32>
      %53 = vector.shape_cast %52 : vector<1x8x8xf32> to vector<8x8xf32>
      %54 = vector.extract_strided_slice %44 {offsets = [1, 0, 0], sizes = [1, 8, 32], strides = [1, 1, 1]} : vector<4x8x32xf32> to vector<1x8x32xf32>
      %55 = vector.shape_cast %54 : vector<1x8x32xf32> to vector<8x32xf32>
      %cst_25 = arith.constant dense<0.000000e+00> : vector<8x32xf32>
      %56 = tpu.matmul %53, %55, %cst_25 {dimension_numbers = #tpu.dot_dimension_numbers<[1], [0], [0], [1], [0, 0, 1, 1], [], []>} : vector<8x8xf32>, vector<8x32xf32>, vector<8x32xf32> -> vector<8x32xf32>
      %57 = arith.addf %51, %56 : vector<8x32xf32>
      %58 = vector.extract_strided_slice %43 {offsets = [2, 0, 0], sizes = [1, 8, 8], strides = [1, 1, 1]} : vector<4x8x8xf32> to vector<1x8x8xf32>
      %59 = vector.shape_cast %58 : vector<1x8x8xf32> to vector<8x8xf32>
      %60 = vector.extract_strided_slice %44 {offsets = [2, 0, 0], sizes = [1, 8, 32], strides = [1, 1, 1]} : vector<4x8x32xf32> to vector<1x8x32xf32>
      %61 = vector.shape_cast %60 : vector<1x8x32xf32> to vector<8x32xf32>
      %cst_26 = arith.constant dense<0.000000e+00> : vector<8x32xf32>
      %62 = tpu.matmul %59, %61, %cst_26 {dimension_numbers = #tpu.dot_dimension_numbers<[1], [0], [0], [1], [0, 0, 1, 1], [], []>} : vector<8x8xf32>, vector<8x32xf32>, vector<8x32xf32> -> vector<8x32xf32>
      %63 = arith.addf %57, %62 : vector<8x32xf32>
      %64 = vector.extract_strided_slice %43 {offsets = [3, 0, 0], sizes = [1, 8, 8], strides = [1, 1, 1]} : vector<4x8x8xf32> to vector<1x8x8xf32>
      %65 = vector.shape_cast %64 : vector<1x8x8xf32> to vector<8x8xf32>
      %66 = vector.extract_strided_slice %44 {offsets = [3, 0, 0], sizes = [1, 8, 32], strides = [1, 1, 1]} : vector<4x8x32xf32> to vector<1x8x32xf32>
      %67 = vector.shape_cast %66 : vector<1x8x32xf32> to vector<8x32xf32>
      %cst_27 = arith.constant dense<0.000000e+00> : vector<8x32xf32>
      %68 = tpu.matmul %65, %67, %cst_27 {dimension_numbers = #tpu.dot_dimension_numbers<[1], [0], [0], [1], [0, 0, 1, 1], [], []>} : vector<8x8xf32>, vector<8x32xf32>, vector<8x32xf32> -> vector<8x32xf32>
      %69 = arith.addf %63, %68 : vector<8x32xf32>
      %c0_28 = arith.constant 0 : index
      %c0_29 = arith.constant 0 : index
      %70 = vector.load %arg14[%c0_28, %c0_29] : memref<1x32xf32, #tpu.memory_space<vmem>>, vector<1x32xf32>
      %71 = vector.broadcast %70 : vector<1x32xf32> to vector<8x32xf32>
      %72 = arith.addf %69, %71 : vector<8x32xf32>
      %c0_30 = arith.constant 0 : index
      %c0_31 = arith.constant 0 : index
      %c0_32 = arith.constant 0 : index
      %73 = vector.load %arg15[%c0_30, %c0_31, %c0_32] : memref<1x8x32xf32, #tpu.memory_space<vmem>>, vector<1x8x32xf32>
      %74 = vector.shape_cast %73 : vector<1x8x32xf32> to vector<8x32xf32>
      %75 = vector.shape_cast %72 : vector<8x32xf32> to vector<1x8x32xf32>
      tpu.vector_store %arg15[%c0_30, %c0_31, %c0_32], %75 {strides = array<i32>} : memref<1x8x32xf32, #tpu.memory_space<vmem>>, vector<1x8x32xf32>,
    } else {
    }
    return
  }
  func.func @transform_0(%arg0: i32, %arg1: i32, %arg2: i32) -> (i32, i32, i32, i32) {
    %c0_i32 = arith.constant 0 : i32
    %c0_i32_0 = arith.constant 0 : i32
    %c0_i32_1 = arith.constant 0 : i32
    return %arg0, %c0_i32, %arg1, %c0_i32_0 : i32, i32, i32, i32
  }
  func.func @transform_1(%arg0: i32, %arg1: i32, %arg2: i32) -> (i32, i32, i32, i32) {
    %0 = arith.minsi %arg2, %arg1 : i32
    %c0_i32 = arith.constant 0 : i32
    %c0_i32_0 = arith.constant 0 : i32
    %c0_i32_1 = arith.constant 0 : i32
    return %arg0, %c0_i32, %0, %c0_i32_0 : i32, i32, i32, i32
  }
  func.func @transform_2(%arg0: i32, %arg1: i32, %arg2: i32) -> (i32, i32, i32) {
    %c0_i32 = arith.constant 0 : i32
    %c0_i32_0 = arith.constant 0 : i32
    %c0_i32_1 = arith.constant 0 : i32
    %c0_i32_2 = arith.constant 0 : i32
    return %c0_i32, %c0_i32_0, %c0_i32_1 : i32, i32, i32
  }
  func.func @transform_3(%arg0: i32, %arg1: i32, %arg2: i32) -> (i32, i32, i32) {
    %c0_i32 = arith.constant 0 : i32
    %c0_i32_0 = arith.constant 0 : i32
    %c0_i32_1 = arith.constant 0 : i32
    %c0_i32_2 = arith.constant 0 : i32
    return %c0_i32, %c0_i32_0, %c0_i32_1 : i32, i32, i32
  }
  func.func @transform_4(%arg0: i32, %arg1: i32, %arg2: i32) -> (i32, i32, i32) {
    %c0_i32 = arith.constant 0 : i32
    %c0_i32_0 = arith.constant 0 : i32
    %c0_i32_1 = arith.constant 0 : i32
    %c0_i32_2 = arith.constant 0 : i32
    return %c0_i32, %c0_i32_0, %c0_i32_1 : i32, i32, i32
  }
  func.func @transform_5(%arg0: i32, %arg1: i32, %arg2: i32) -> (i32, i32, i32) {
    %c0_i32 = arith.constant 0 : i32
    %c0_i32_0 = arith.constant 0 : i32
    %c0_i32_1 = arith.constant 0 : i32
    %c0_i32_2 = arith.constant 0 : i32
    return %c0_i32, %c0_i32_0, %c0_i32_1 : i32, i32, i32
  }
  func.func @transform_6(%arg0: i32, %arg1: i32, %arg2: i32) -> (i32, i32, i32) {
    %c0_i32 = arith.constant 0 : i32
    %c0_i32_0 = arith.constant 0 : i32
    %c0_i32_1 = arith.constant 0 : i32
    %c0_i32_2 = arith.constant 0 : i32
    return %c0_i32, %c0_i32_0, %c0_i32_1 : i32, i32, i32
  }
  func.func @transform_7(%arg0: i32, %arg1: i32, %arg2: i32) -> (i32, i32, i32) {
    %c0_i32 = arith.constant 0 : i32
    %c0_i32_0 = arith.constant 0 : i32
    %c0_i32_1 = arith.constant 0 : i32
    %c0_i32_2 = arith.constant 0 : i32
    return %c0_i32, %c0_i32_0, %c0_i32_1 : i32, i32, i32
  }
  func.func @transform_8(%arg0: i32, %arg1: i32, %arg2: i32) -> (i32, i32, i32) {
    %c0_i32 = arith.constant 0 : i32
    %c0_i32_0 = arith.constant 0 : i32
    %c0_i32_1 = arith.constant 0 : i32
    %c0_i32_2 = arith.constant 0 : i32
    return %c0_i32, %c0_i32_0, %c0_i32_1 : i32, i32, i32
  }
  func.func @transform_9(%arg0: i32, %arg1: i32, %arg2: i32) -> (i32, i32, i32) {
    %c0_i32 = arith.constant 0 : i32
    %c0_i32_0 = arith.constant 0 : i32
    %c0_i32_1 = arith.constant 0 : i32
    %c0_i32_2 = arith.constant 0 : i32
    return %c0_i32, %c0_i32_0, %c0_i32_1 : i32, i32, i32
  }
  func.func @transform_10(%arg0: i32, %arg1: i32, %arg2: i32) -> (i32, i32, i32) {
    %c0_i32 = arith.constant 0 : i32
    %c0_i32_0 = arith.constant 0 : i32
    %c0_i32_1 = arith.constant 0 : i32
    %c0_i32_2 = arith.constant 0 : i32
    return %c0_i32, %c0_i32_0, %c0_i32_1 : i32, i32, i32
  }
  func.func @transform_11(%arg0: i32, %arg1: i32, %arg2: i32) -> (i32, i32) {
    %c0_i32 = arith.constant 0 : i32
    %c0_i32_0 = arith.constant 0 : i32
    %c0_i32_1 = arith.constant 0 : i32
    return %c0_i32, %c0_i32_0 : i32, i32
  }
  func.func @transform_12(%arg0: i32, %arg1: i32, %arg2: i32) -> (i32, i32, i32) {
    %c0_i32 = arith.constant 0 : i32
    %c0_i32_0 = arith.constant 0 : i32
    return %arg0, %arg1, %c0_i32 : i32, i32, i32
  }
}

</mosaic_0001>

<llo_original>
// kernel: tpu_custom_call.1
$region0: #{tpu_custom_call.1}
  #allocation0 [shape = 'u32[]', space=smem, size = 0x4, offset = 0x4, fixed_abs, tag = 'smem constant byte address 0x4 - core index']
  #allocation1 [shape = 'u32[144,128]{1,0:T(1,128)}', space=vmem, size = 0x12000, scoped, tag = 'internal scratch']
  #allocation2 [shape = 'f32[4,8,8]{2,1,0:T(8,128)}', space=vmem, size = 0x4000, scoped, tag = 'scratch operand']
  %s0 = inlined_call_operand.vmem [shape: f32[2,4,16,8], index: 0, kind: input, shape index: {}]
  %s1 = inlined_call_operand.vmem [shape: f32[2,4,16,8], index: 1, kind: input, shape index: {}]
  %s2 = inlined_call_operand.vmem [shape: f32[4,8,8], index: 2, kind: input, shape index: {}]
  %s3 = inlined_call_operand.vmem [shape: f32[4,1,8], index: 3, kind: input, shape index: {}]
  %s4 = inlined_call_operand.vmem [shape: f32[4,8,8], index: 4, kind: input, shape index: {}]
  %s5 = inlined_call_operand.vmem [shape: f32[4,1,8], index: 5, kind: input, shape index: {}]
  %s6 = inlined_call_operand.vmem [shape: f32[4,8,8], index: 6, kind: input, shape index: {}]
  %s7 = inlined_call_operand.vmem [shape: f32[4,1,8], index: 7, kind: input, shape index: {}]
  %s8 = inlined_call_operand.vmem [shape: f32[4,1,8], index: 8, kind: input, shape index: {}]
  %s9 = inlined_call_operand.vmem [shape: f32[4,1,8], index: 9, kind: input, shape index: {}]
  %s10 = inlined_call_operand.vmem [shape: f32[4,8,32], index: 10, kind: input, shape index: {}]
  %s11 = inlined_call_operand.vmem [shape: f32[1,32], index: 11, kind: input, shape index: {}]
  %s12 = inlined_call_operand.hbm [shape: f32[2,16,32], index: 12, kind: output, shape index: {}]
  %s13 = sld [smem:[#allocation0]]
  $region169: #{tpu_custom_call.1} parent=0
    _
  %s15 = ssub.s32 1, %s13
  %s16 = scalar_select 0, %s15, %s13
  $region1: #{tpu_custom_call.1} parent=0
    #allocation3 [shape = 'u8[32768]{0}', space=vmem, size = 0x8000, scoped, tag = 'input window, operand 0']
    #allocation4 [shape = 'u8[32768]{0}', space=vmem, size = 0x8000, scoped, tag = 'input window, operand 1']
    #allocation5 [shape = 'u8[8192]{0}', space=vmem, size = 0x2000, scoped, tag = 'output window, operand 0']
    #allocation6 [shape = 's32[2]{0}', space=sflag, size = 0x8, scoped, tag = 'scoped memory for tpu_custom_call.1']
    %17 = vsyncpa [#allocation6], 0
    %s18 = scalar_lea.sflag [#allocation6], 1
    %19 = vsyncpa %s18, 0
    loop: start=0, step=1, limit=10
    $region2: #{tpu_custom_call.1} parent=1 // loop_pre_header
      _
    $region3: #{tpu_custom_call.1} parent=1 // loop_header
      %s21 = sphi 0, %s25
      %p22 = scmp.ge.s32.totalorder %s21, 10
      %s28 = sphi 0, %s47
      %s29 = sphi 0, %s43
      %s30 = sphi 0, %s39
      %s31 = sphi 0, %s28
      %s32 = sphi 0, %s29
      %s33 = sphi 0, %s30
      %s34 = sphi 0, %s31
      %s35 = sphi 0, %s32
      %s36 = sphi 0, %s33
      %s52 = sphi 0, %s54
      %s55 = sphi 0, %s52
      %s56 = sphi 0, %s55
      %s72 = sphi 0, %s56
      %s84 = sphi 0, %s86
      %s87 = sphi 0, %s84
      %s88 = sphi 0, %s87
      %s104 = sphi 0, %s88
      %s108 = sphi 0, %s108
      %s110 = sphi 0, %s108
      %s111 = sphi 0, %s110
      %s125 = sphi 0, %s111
      %s129 = sphi 0, %s129
      %s131 = sphi 0, %s129
      %s132 = sphi 0, %s131
      %s146 = sphi 0, %s132
      %s150 = sphi 0, %s150
      %s152 = sphi 0, %s150
      %s153 = sphi 0, %s152
      %s167 = sphi 0, %s153
      %s171 = sphi 0, %s171
      %s173 = sphi 0, %s171
      %s174 = sphi 0, %s173
      %s188 = sphi 0, %s174
      %s192 = sphi 0, %s192
      %s194 = sphi 0, %s192
      %s195 = sphi 0, %s194
      %s209 = sphi 0, %s195
      %s213 = sphi 0, %s213
      %s215 = sphi 0, %s213
      %s216 = sphi 0, %s215
      %s230 = sphi 0, %s216
      %s234 = sphi 0, %s234
      %s236 = sphi 0, %s234
      %s237 = sphi 0, %s236
      %s251 = sphi 0, %s237
      %s255 = sphi 0, %s255
      %s257 = sphi 0, %s255
      %s258 = sphi 0, %s257
      %s272 = sphi 0, %s258
      %s276 = sphi 0, %s276
      %s278 = sphi 0, %s276
      %s279 = sphi 0, %s278
      %s293 = sphi 0, %s279
      %s297 = sphi 0, %s297
      %s299 = sphi 0, %s297
      %s300 = sphi 0, %s299
      %s314 = sphi 0, %s300
      %s322 = sphi 0, %s324
      %s325 = sphi 0, %s322
      %s326 = sphi 0, %s325
      %s342 = sphi 0, %s326
    $region4: #{tpu_custom_call.1} parent=1 // loop_header_branch
      %24 = sbr.rel (%p22) target = $region8
    $region5: #{tpu_custom_call.1} parent=1 // loop_body
      %s26 = ssub.s32 %s21, 1
      %s27 = ssub.s32 %s21, 2
      %s37 = sadd.s32 1, %s30
      %p38 = scmp.ge.s32.totalorder %s37, 2
      %s39 = scalar_select %p38, 0, %s37
      %s40 = sadd.s32 1, %s29
      %s41 = scalar_select %p38, %s40, %s29
      %p42 = scmp.ge.s32.totalorder %s41, 2
      %s43 = scalar_select %p42, 0, %s41
      %s44 = sadd.s32 1, %s28
      %s45 = scalar_select %p42, %s44, %s28
      %p46 = scmp.ge.s32.totalorder %s45, 2
      %s47 = scalar_select %p46, 0, %s45
      %s48 = ssub.s32 %s28, %s47
      %s49 = ssub.s32 %s29, %s43
      %s50 = sor.u32 %s48, %s49
      %p51 = scmp.eq.s32.totalorder %s50, 0
      %s53 = sadd.s32 %s52, 1
      %s54 = scalar_select %p51, %s52, %s53
      %p57 = pneg %p51
      %p58 = scmp.eq.s32.totalorder %s21, 7
      %p59 = por %p57, %p58
      %p60 = scmp.ne.s32.totalorder %s52, %s55
      %p61 = scmp.eq.s32.totalorder %s21, 0
      %p62 = por %p60, %p61
      %p63 = scmp.ne.s32.totalorder %s52, %s55
      %p64 = scmp.eq.s32.totalorder %s26, 7
      %p65 = por %p63, %p64
      %p66 = scmp.ne.s32.totalorder %s55, %s56
      %p67 = scmp.eq.s32.totalorder %s26, 0
      %p68 = por %p66, %p67
      %p69 = scmp.ne.s32.totalorder %s55, %s56
      %p70 = scmp.eq.s32.totalorder %s27, 7
      %p71 = por %p69, %p70
      %p73 = scmp.ne.s32.totalorder %s56, %s72
      %p74 = scmp.eq.s32.totalorder %s27, 0
      %p75 = por %p73, %p74
      %p76 = scmp.lt.s32.totalorder %s30, %s29
      %s77 = scalar_select %p76, %s30, %s29
      %p78 = scmp.lt.s32.totalorder %s39, %s43
      %s79 = scalar_select %p78, %s39, %s43
      %s80 = ssub.s32 %s28, %s47
      %s81 = ssub.s32 %s77, %s79
      %s82 = sor.u32 %s80, %s81
      %p83 = scmp.eq.s32.totalorder %s82, 0
      %s85 = sadd.s32 %s84, 1
      %s86 = scalar_select %p83, %s84, %s85
      %p89 = pneg %p83
      %p90 = scmp.eq.s32.totalorder %s21, 7
      %p91 = por %p89, %p90
      %p92 = scmp.ne.s32.totalorder %s84, %s87
      %p93 = scmp.eq.s32.totalorder %s21, 0
      %p94 = por %p92, %p93
      %p95 = scmp.ne.s32.totalorder %s84, %s87
      %p96 = scmp.eq.s32.totalorder %s26, 7
      %p97 = por %p95, %p96
      %p98 = scmp.ne.s32.totalorder %s87, %s88
      %p99 = scmp.eq.s32.totalorder %s26, 0
      %p100 = por %p98, %p99
      %p101 = scmp.ne.s32.totalorder %s87, %s88
      %p102 = scmp.eq.s32.totalorder %s27, 7
      %p103 = por %p101, %p102
      %p105 = scmp.ne.s32.totalorder %s88, %s104
      %p106 = scmp.eq.s32.totalorder %s27, 0
      %p107 = por %p105, %p106
      %s109 = sadd.s32 %s108, 1
      %p112 = scmp.eq.s32.totalorder %s21, 7
      %p113 = scmp.ne.s32.totalorder %s108, %s110
      %p114 = scmp.eq.s32.totalorder %s21, 0
      %p115 = por %p113, %p114
      %p116 = scmp.ne.s32.totalorder %s108, %s110
      %p117 = scmp.eq.s32.totalorder %s26, 7
      %p118 = por %p116, %p117
      %p119 = scmp.ne.s32.totalorder %s110, %s111
      %p120 = scmp.eq.s32.totalorder %s26, 0
      %p121 = por %p119, %p120
      %p122 = scmp.ne.s32.totalorder %s110, %s111
      %p123 = scmp.eq.s32.totalorder %s27, 7
      %p124 = por %p122, %p123
      %p126 = scmp.ne.s32.totalorder %s111, %s125
      %p127 = scmp.eq.s32.totalorder %s27, 0
      %p128 = por %p126, %p127
      %s130 = sadd.s32 %s129, 1
      %p133 = scmp.eq.s32.totalorder %s21, 7
      %p134 = scmp.ne.s32.totalorder %s129, %s131
      %p135 = scmp.eq.s32.totalorder %s21, 0
      %p136 = por %p134, %p135
      %p137 = scmp.ne.s32.totalorder %s129, %s131
      %p138 = scmp.eq.s32.totalorder %s26, 7
      %p139 = por %p137, %p138
      %p140 = scmp.ne.s32.totalorder %s131, %s132
      %p141 = scmp.eq.s32.totalorder %s26, 0
      %p142 = por %p140, %p141
      %p143 = scmp.ne.s32.totalorder %s131, %s132
      %p144 = scmp.eq.s32.totalorder %s27, 7
      %p145 = por %p143, %p144
      %p147 = scmp.ne.s32.totalorder %s132, %s146
      %p148 = scmp.eq.s32.totalorder %s27, 0
      %p149 = por %p147, %p148
      %s151 = sadd.s32 %s150, 1
      %p154 = scmp.eq.s32.totalorder %s21, 7
      %p155 = scmp.ne.s32.totalorder %s150, %s152
      %p156 = scmp.eq.s32.totalorder %s21, 0
      %p157 = por %p155, %p156
      %p158 = scmp.ne.s32.totalorder %s150, %s152
      %p159 = scmp.eq.s32.totalorder %s26, 7
      %p160 = por %p158, %p159
      %p161 = scmp.ne.s32.totalorder %s152, %s153
      %p162 = scmp.eq.s32.totalorder %s26, 0
      %p163 = por %p161, %p162
      %p164 = scmp.ne.s32.totalorder %s152, %s153
      %p165 = scmp.eq.s32.totalorder %s27, 7
      %p166 = por %p164, %p165
      %p168 = scmp.ne.s32.totalorder %s153, %s167
      %p169 = scmp.eq.s32.totalorder %s27, 0
      %p170 = por %p168, %p169
      %s172 = sadd.s32 %s171, 1
      %p175 = scmp.eq.s32.totalorder %s21, 7
      %p176 = scmp.ne.s32.totalorder %s171, %s173
      %p177 = scmp.eq.s32.totalorder %s21, 0
      %p178 = por %p176, %p177
      %p179 = scmp.ne.s32.totalorder %s171, %s173
      %p180 = scmp.eq.s32.totalorder %s26, 7
      %p181 = por %p179, %p180
      %p182 = scmp.ne.s32.totalorder %s173, %s174
      %p183 = scmp.eq.s32.totalorder %s26, 0
      %p184 = por %p182, %p183
      %p185 = scmp.ne.s32.totalorder %s173, %s174
      %p186 = scmp.eq.s32.totalorder %s27, 7
      %p187 = por %p185, %p186
      %p189 = scmp.ne.s32.totalorder %s174, %s188
      %p190 = scmp.eq.s32.totalorder %s27, 0
      %p191 = por %p189, %p190
      %s193 = sadd.s32 %s192, 1
      %p196 = scmp.eq.s32.totalorder %s21, 7
      %p197 = scmp.ne.s32.totalorder %s192, %s194
      %p198 = scmp.eq.s32.totalorder %s21, 0
      %p199 = por %p197, %p198
      %p200 = scmp.ne.s32.totalorder %s192, %s194
      %p201 = scmp.eq.s32.totalorder %s26, 7
      %p202 = por %p200, %p201
      %p203 = scmp.ne.s32.totalorder %s194, %s195
      %p204 = scmp.eq.s32.totalorder %s26, 0
      %p205 = por %p203, %p204
      %p206 = scmp.ne.s32.totalorder %s194, %s195
      %p207 = scmp.eq.s32.totalorder %s27, 7
      %p208 = por %p206, %p207
      %p210 = scmp.ne.s32.totalorder %s195, %s209
      %p211 = scmp.eq.s32.totalorder %s27, 0
      %p212 = por %p210, %p211
      %s214 = sadd.s32 %s213, 1
      %p217 = scmp.eq.s32.totalorder %s21, 7
      %p218 = scmp.ne.s32.totalorder %s213, %s215
      %p219 = scmp.eq.s32.totalorder %s21, 0
      %p220 = por %p218, %p219
      %p221 = scmp.ne.s32.totalorder %s213, %s215
      %p222 = scmp.eq.s32.totalorder %s26, 7
      %p223 = por %p221, %p222
      %p224 = scmp.ne.s32.totalorder %s215, %s216
      %p225 = scmp.eq.s32.totalorder %s26, 0
      %p226 = por %p224, %p225
      %p227 = scmp.ne.s32.totalorder %s215, %s216
      %p228 = scmp.eq.s32.totalorder %s27, 7
      %p229 = por %p227, %p228
      %p231 = scmp.ne.s32.totalorder %s216, %s230
      %p232 = scmp.eq.s32.totalorder %s27, 0
      %p233 = por %p231, %p232
      %s235 = sadd.s32 %s234, 1
      %p238 = scmp.eq.s32.totalorder %s21, 7
      %p239 = scmp.ne.s32.totalorder %s234, %s236
      %p240 = scmp.eq.s32.totalorder %s21, 0
      %p241 = por %p239, %p240
      %p242 = scmp.ne.s32.totalorder %s234, %s236
      %p243 = scmp.eq.s32.totalorder %s26, 7
      %p244 = por %p242, %p243
      %p245 = scmp.ne.s32.totalorder %s236, %s237
      %p246 = scmp.eq.s32.totalorder %s26, 0
      %p247 = por %p245, %p246
      %p248 = scmp.ne.s32.totalorder %s236, %s237
      %p249 = scmp.eq.s32.totalorder %s27, 7
      %p250 = por %p248, %p249
      %p252 = scmp.ne.s32.totalorder %s237, %s251
      %p253 = scmp.eq.s32.totalorder %s27, 0
      %p254 = por %p252, %p253
      %s256 = sadd.s32 %s255, 1
      %p259 = scmp.eq.s32.totalorder %s21, 7
      %p260 = scmp.ne.s32.totalorder %s255, %s257
      %p261 = scmp.eq.s32.totalorder %s21, 0
      %p262 = por %p260, %p261
      %p263 = scmp.ne.s32.totalorder %s255, %s257
      %p264 = scmp.eq.s32.totalorder %s26, 7
      %p265 = por %p263, %p264
      %p266 = scmp.ne.s32.totalorder %s257, %s258
      %p267 = scmp.eq.s32.totalorder %s26, 0
      %p268 = por %p266, %p267
      %p269 = scmp.ne.s32.totalorder %s257, %s258
      %p270 = scmp.eq.s32.totalorder %s27, 7
      %p271 = por %p269, %p270
      %p273 = scmp.ne.s32.totalorder %s258, %s272
      %p274 = scmp.eq.s32.totalorder %s27, 0
      %p275 = por %p273, %p274
      %s277 = sadd.s32 %s276, 1
      %p280 = scmp.eq.s32.totalorder %s21, 7
      %p281 = scmp.ne.s32.totalorder %s276, %s278
      %p282 = scmp.eq.s32.totalorder %s21, 0
      %p283 = por %p281, %p282
      %p284 = scmp.ne.s32.totalorder %s276, %s278
      %p285 = scmp.eq.s32.totalorder %s26, 7
      %p286 = por %p284, %p285
      %p287 = scmp.ne.s32.totalorder %s278, %s279
      %p288 = scmp.eq.s32.totalorder %s26, 0
      %p289 = por %p287, %p288
      %p290 = scmp.ne.s32.totalorder %s278, %s279
      %p291 = scmp.eq.s32.totalorder %s27, 7
      %p292 = por %p290, %p291
      %p294 = scmp.ne.s32.totalorder %s279, %s293
      %p295 = scmp.eq.s32.totalorder %s27, 0
      %p296 = por %p294, %p295
      %s298 = sadd.s32 %s297, 1
      %p301 = scmp.eq.s32.totalorder %s21, 7
      %p302 = scmp.ne.s32.totalorder %s297, %s299
      %p303 = scmp.eq.s32.totalorder %s21, 0
      %p304 = por %p302, %p303
      %p305 = scmp.ne.s32.totalorder %s297, %s299
      %p306 = scmp.eq.s32.totalorder %s26, 7
      %p307 = por %p305, %p306
      %p308 = scmp.ne.s32.totalorder %s299, %s300
      %p309 = scmp.eq.s32.totalorder %s26, 0
      %p310 = por %p308, %p309
      %p311 = scmp.ne.s32.totalorder %s299, %s300
      %p312 = scmp.eq.s32.totalorder %s27, 7
      %p313 = por %p311, %p312
      %p315 = scmp.ne.s32.totalorder %s300, %s314
      %p316 = scmp.eq.s32.totalorder %s27, 0
      %p317 = por %p315, %p316
      %s318 = ssub.s32 %s28, %s47
      %s319 = ssub.s32 %s29, %s43
      %s320 = sor.u32 %s318, %s319
      %p321 = scmp.eq.s32.totalorder %s320, 0
      %s323 = sadd.s32 %s322, 1
      %s324 = scalar_select %p321, %s322, %s323
      %p327 = pneg %p321
      %p328 = scmp.eq.s32.totalorder %s21, 7
      %p329 = por %p327, %p328
      %p330 = scmp.ne.s32.totalorder %s322, %s325
      %p331 = scmp.eq.s32.totalorder %s21, 0
      %p332 = por %p330, %p331
      %p333 = scmp.ne.s32.totalorder %s322, %s325
      %p334 = scmp.eq.s32.totalorder %s26, 7
      %p335 = por %p333, %p334
      %p336 = scmp.ne.s32.totalorder %s325, %s326
      %p337 = scmp.eq.s32.totalorder %s26, 0
      %p338 = por %p336, %p337
      %p339 = scmp.ne.s32.totalorder %s325, %s326
      %p340 = scmp.eq.s32.totalorder %s27, 7
      %p341 = por %p339, %p340
      %p343 = scmp.ne.s32.totalorder %s326, %s342
      %p344 = scmp.eq.s32.totalorder %s27, 0
      %p345 = por %p343, %p344
      %p346 = scmp.le.s32.totalorder 1, %s21
      %p347 = scmp.lt.s32.totalorder %s21, 9
      %p348 = pnand %p346, %p347
      %p349 = pneg %p348
      // Predicated region
      $region9: #{tpu_custom_call.1} parent=5 // pred_check
        _
      $region10: #{tpu_custom_call.1} parent=5 // pred_check_branch
        %351 = sbr.rel (%p348) target = $region12
      $region11: #{tpu_custom_call.1} parent=5 // pred_region
        %s352 = ssub.s32 %s21, 1
        // Predicated region
        $region13: #{tpu_custom_call.1} parent=11 // pred_check
          %p353 = pneg %p121
        $region14: #{tpu_custom_call.1} parent=11 // pred_check_branch
          %355 = sbr.rel (%p353) target = $region16
        $region15: #{tpu_custom_call.1} parent=11 // pred_region
          _
        $region16: #{tpu_custom_call.1} parent=11 // pred_fallthru
          _
        // Predicated region
        $region17: #{tpu_custom_call.1} parent=11 // pred_check
          %p356 = pneg %p142
        $region18: #{tpu_custom_call.1} parent=11 // pred_check_branch
          %358 = sbr.rel (%p356) target = $region20
        $region19: #{tpu_custom_call.1} parent=11 // pred_region
          _
        $region20: #{tpu_custom_call.1} parent=11 // pred_fallthru
          _
        // Predicated region
        $region21: #{tpu_custom_call.1} parent=11 // pred_check
          %p359 = pneg %p163
        $region22: #{tpu_custom_call.1} parent=11 // pred_check_branch
          %361 = sbr.rel (%p359) target = $region24
        $region23: #{tpu_custom_call.1} parent=11 // pred_region
          _
        $region24: #{tpu_custom_call.1} parent=11 // pred_fallthru
          _
        // Predicated region
        $region25: #{tpu_custom_call.1} parent=11 // pred_check
          %p362 = pneg %p184
        $region26: #{tpu_custom_call.1} parent=11 // pred_check_branch
          %364 = sbr.rel (%p362) target = $region28
        $region27: #{tpu_custom_call.1} parent=11 // pred_region
          _
        $region28: #{tpu_custom_call.1} parent=11 // pred_fallthru
          _
        // Predicated region
        $region29: #{tpu_custom_call.1} parent=11 // pred_check
          %p365 = pneg %p205
        $region30: #{tpu_custom_call.1} parent=11 // pred_check_branch
          %367 = sbr.rel (%p365) target = $region32
        $region31: #{tpu_custom_call.1} parent=11 // pred_region
          _
        $region32: #{tpu_custom_call.1} parent=11 // pred_fallthru
          _
        // Predicated region
        $region33: #{tpu_custom_call.1} parent=11 // pred_check
          %p368 = pneg %p226
        $region34: #{tpu_custom_call.1} parent=11 // pred_check_branch
          %370 = sbr.rel (%p368) target = $region36
        $region35: #{tpu_custom_call.1} parent=11 // pred_region
          _
        $region36: #{tpu_custom_call.1} parent=11 // pred_fallthru
          _
        // Predicated region
        $region37: #{tpu_custom_call.1} parent=11 // pred_check
          %p371 = pneg %p247
        $region38: #{tpu_custom_call.1} parent=11 // pred_check_branch
          %373 = sbr.rel (%p371) target = $region40
        $region39: #{tpu_custom_call.1} parent=11 // pred_region
          _
        $region40: #{tpu_custom_call.1} parent=11 // pred_fallthru
          _
        // Predicated region
        $region41: #{tpu_custom_call.1} parent=11 // pred_check
          %p374 = pneg %p268
        $region42: #{tpu_custom_call.1} parent=11 // pred_check_branch
          %376 = sbr.rel (%p374) target = $region44
        $region43: #{tpu_custom_call.1} parent=11 // pred_region
          _
        $region44: #{tpu_custom_call.1} parent=11 // pred_fallthru
          _
        // Predicated region
        $region45: #{tpu_custom_call.1} parent=11 // pred_check
          %p377 = pneg %p289
        $region46: #{tpu_custom_call.1} parent=11 // pred_check_branch
          %379 = sbr.rel (%p377) target = $region48
        $region47: #{tpu_custom_call.1} parent=11 // pred_region
          _
        $region48: #{tpu_custom_call.1} parent=11 // pred_fallthru
          _
        // Predicated region
        $region49: #{tpu_custom_call.1} parent=11 // pred_check
          %p380 = pneg %p310
        $region50: #{tpu_custom_call.1} parent=11 // pred_check_branch
          %382 = sbr.rel (%p380) target = $region52
        $region51: #{tpu_custom_call.1} parent=11 // pred_region
          _
        $region52: #{tpu_custom_call.1} parent=11 // pred_fallthru
          _
      $region12: #{tpu_custom_call.1} parent=5 // pred_fallthru
        _
      %p383 = scmp.lt.s32.totalorder %s21, 8
      // Predicated region
      $region53: #{tpu_custom_call.1} parent=5 // pred_check
        %p384 = pneg %p383
      $region54: #{tpu_custom_call.1} parent=5 // pred_check_branch
        %386 = sbr.rel (%p384) target = $region56
      $region55: #{tpu_custom_call.1} parent=5 // pred_region
        // Predicated region
        $region57: #{tpu_custom_call.1} parent=55 // pred_check
          %p387 = pneg %p62
        $region58: #{tpu_custom_call.1} parent=55 // pred_check_branch
          %389 = sbr.rel (%p387) target = $region60
        $region59: #{tpu_custom_call.1} parent=55 // pred_region
          %s390 = sand.u32 %s52, 1
          %s391 = sand.u32 %s52, 1
          %s392 = smul.addr %s391, 32
          %s393 = scalar_lea.vmem [#allocation3], %s392
          %s394 = smul.addr %s28, 8
          %s395 = sadd.s32 %s29, %s394
          %s396 = smul.addr %s395, 8
          %s397 = scalar_lea.vmem %s0, %s396
          // Predicated region
          $region61: #{tpu_custom_call.1} parent=59 // pred_check
            _
          $region62: #{tpu_custom_call.1} parent=59 // pred_check_branch
            %399 = sbr.rel (0) target = $region64
          $region63: #{tpu_custom_call.1} parent=59 // pred_region
            // Predicated region
            $region65: #{tpu_custom_call.1} parent=63 // pred_check
              _
            $region66: #{tpu_custom_call.1} parent=63 // pred_check_branch
              %401 = sbr.rel (0) target = $region68
            $region67: #{tpu_custom_call.1} parent=63 // pred_region
              // Predicated region
              $region80: #{tpu_custom_call.1} parent=67 // pred_check
                _
              $region81: #{tpu_custom_call.1} parent=67 // pred_check_branch
                %423 = sbr.rel (0) target = $region83
              $region82: #{tpu_custom_call.1} parent=67 // pred_region
                loop: start=0, step=1, limit=1
                $region84: #{tpu_custom_call.1} parent=82 // loop_pre_header
                  _
                $region85: #{tpu_custom_call.1} parent=82 // loop_header
                  %s425 = sphi 0, %s429
                  %p426 = scmp.ge.s32.totalorder %s425, 1
                  %s430 = sphi %s397, %s397
                  %s431 = sphi %s393, %s393
                $region86: #{tpu_custom_call.1} parent=82 // loop_header_branch
                  %428 = sbr.rel (%p426) target = $region90
                $region87: #{tpu_custom_call.1} parent=82 // loop_body
                  %v432 = vld [vmem:[%s430] sm:$0xff]
                  %433 = vst [vmem:[%s431] sm:$0xff] %v432
                  %v434 = vld [vmem:[%s430 + $0x10] sm:$0xff]
                  %435 = vst [vmem:[%s431 + $0x8] sm:$0xff] %v434
                  %v436 = vld [vmem:[%s430 + $0x20] sm:$0xff]
                  %437 = vst [vmem:[%s431 + $0x10] sm:$0xff] %v436
                  %v438 = vld [vmem:[%s430 + $0x30] sm:$0xff]
                  %439 = vst [vmem:[%s431 + $0x18] sm:$0xff] %v438
                $region88: #{tpu_custom_call.1} parent=82 // loop_footer
                  %s429 = sadd.s32 1, %s425
                $region89: #{tpu_custom_call.1} parent=82 // loop_footer_branch
                  %424 = sbr.rel target = $region85
                $region90: #{tpu_custom_call.1} parent=82 // loop_exit
                  _
              $region83: #{tpu_custom_call.1} parent=67 // pred_fallthru
                _
              // Predicated region
              $region91: #{tpu_custom_call.1} parent=67 // pred_check
                _
              $region92: #{tpu_custom_call.1} parent=67 // pred_check_branch
                %441 = sbr.rel target = $region94
              $region93: #{tpu_custom_call.1} parent=67 // pred_region
                _
              $region94: #{tpu_custom_call.1} parent=67 // pred_fallthru
                _
            $region68: #{tpu_custom_call.1} parent=63 // pred_fallthru
              _
            // Predicated region
            $region69: #{tpu_custom_call.1} parent=63 // pred_check
              _
            $region70: #{tpu_custom_call.1} parent=63 // pred_check_branch
              %403 = sbr.rel target = $region72
            $region71: #{tpu_custom_call.1} parent=63 // pred_region
              %s405 = ssub.s32 256, 1
              loop: start=0, step=1, limit=1
              $region73: #{tpu_custom_call.1} parent=71 // loop_pre_header
                _
              $region74: #{tpu_custom_call.1} parent=71 // loop_header
                %s407 = sphi 0, %s411
                %p408 = scmp.ge.s32.totalorder %s407, 1
                %s412 = sphi %s397, %s397
                %s413 = sphi %s393, %s393
              $region75: #{tpu_custom_call.1} parent=71 // loop_header_branch
                %410 = sbr.rel (%p408) target = $region79
              $region76: #{tpu_custom_call.1} parent=71 // loop_body
                %v414 = vld [vmem:[%s412] sm:%s405]
                %415 = vst [vmem:[%s413] sm:%s405] %v414
                %v416 = vld [vmem:[%s412 + $0x10] sm:%s405]
                %417 = vst [vmem:[%s413 + $0x8] sm:%s405] %v416
                %v418 = vld [vmem:[%s412 + $0x20] sm:%s405]
                %419 = vst [vmem:[%s413 + $0x10] sm:%s405] %v418
                %v420 = vld [vmem:[%s412 + $0x30] sm:%s405]
                %421 = vst [vmem:[%s413 + $0x18] sm:%s405] %v420
              $region77: #{tpu_custom_call.1} parent=71 // loop_footer
                %s411 = sadd.s32 1, %s407
              $region78: #{tpu_custom_call.1} parent=71 // loop_footer_branch
                %406 = sbr.rel target = $region74
              $region79: #{tpu_custom_call.1} parent=71 // loop_exit
                _
            $region72: #{tpu_custom_call.1} parent=63 // pred_fallthru
              _
          $region64: #{tpu_custom_call.1} parent=59 // pred_fallthru
            _
          %442 = vnop
        $region60: #{tpu_custom_call.1} parent=55 // pred_fallthru
          _
        // Predicated region
        $region95: #{tpu_custom_call.1} parent=55 // pred_check
          %p443 = pneg %p94
        $region96: #{tpu_custom_call.1} parent=55 // pred_check_branch
          %445 = sbr.rel (%p443) target = $region98
        $region97: #{tpu_custom_call.1} parent=55 // pred_region
          %s446 = sand.u32 %s84, 1
          %s447 = sand.u32 %s84, 1
          %s448 = smul.addr %s447, 32
          %s449 = scalar_lea.vmem [#allocation4], %s448
          %p450 = scmp.lt.s32.totalorder %s30, %s29
          %s451 = scalar_select %p450, %s30, %s29
          %s452 = smul.addr %s28, 8
          %s453 = sadd.s32 %s451, %s452
          %s454 = smul.addr %s453, 8
          %s455 = scalar_lea.vmem %s1, %s454
          // Predicated region
          $region99: #{tpu_custom_call.1} parent=97 // pred_check
            _
          $region100: #{tpu_custom_call.1} parent=97 // pred_check_branch
            %457 = sbr.rel (0) target = $region102
          $region101: #{tpu_custom_call.1} parent=97 // pred_region
            // Predicated region
            $region103: #{tpu_custom_call.1} parent=101 // pred_check
              _
            $region104: #{tpu_custom_call.1} parent=101 // pred_check_branch
              %459 = sbr.rel (0) target = $region106
            $region105: #{tpu_custom_call.1} parent=101 // pred_region
              // Predicated region
              $region118: #{tpu_custom_call.1} parent=105 // pred_check
                _
              $region119: #{tpu_custom_call.1} parent=105 // pred_check_branch
                %481 = sbr.rel (0) target = $region121
              $region120: #{tpu_custom_call.1} parent=105 // pred_region
                loop: start=0, step=1, limit=1
                $region122: #{tpu_custom_call.1} parent=120 // loop_pre_header
                  _
                $region123: #{tpu_custom_call.1} parent=120 // loop_header
                  %s483 = sphi 0, %s487
                  %p484 = scmp.ge.s32.totalorder %s483, 1
                  %s488 = sphi %s455, %s455
                  %s489 = sphi %s449, %s449
                $region124: #{tpu_custom_call.1} parent=120 // loop_header_branch
                  %486 = sbr.rel (%p484) target = $region128
                $region125: #{tpu_custom_call.1} parent=120 // loop_body
                  %v490 = vld [vmem:[%s488] sm:$0xff]
                  %491 = vst [vmem:[%s489] sm:$0xff] %v490
                  %v492 = vld [vmem:[%s488 + $0x10] sm:$0xff]
                  %493 = vst [vmem:[%s489 + $0x8] sm:$0xff] %v492
                  %v494 = vld [vmem:[%s488 + $0x20] sm:$0xff]
                  %495 = vst [vmem:[%s489 + $0x10] sm:$0xff] %v494
                  %v496 = vld [vmem:[%s488 + $0x30] sm:$0xff]
                  %497 = vst [vmem:[%s489 + $0x18] sm:$0xff] %v496
                $region126: #{tpu_custom_call.1} parent=120 // loop_footer
                  %s487 = sadd.s32 1, %s483
                $region127: #{tpu_custom_call.1} parent=120 // loop_footer_branch
                  %482 = sbr.rel target = $region123
                $region128: #{tpu_custom_call.1} parent=120 // loop_exit
                  _
              $region121: #{tpu_custom_call.1} parent=105 // pred_fallthru
                _
              // Predicated region
              $region129: #{tpu_custom_call.1} parent=105 // pred_check
                _
              $region130: #{tpu_custom_call.1} parent=105 // pred_check_branch
                %499 = sbr.rel target = $region132
              $region131: #{tpu_custom_call.1} parent=105 // pred_region
                _
              $region132: #{tpu_custom_call.1} parent=105 // pred_fallthru
                _
            $region106: #{tpu_custom_call.1} parent=101 // pred_fallthru
              _
            // Predicated region
            $region107: #{tpu_custom_call.1} parent=101 // pred_check
              _
            $region108: #{tpu_custom_call.1} parent=101 // pred_check_branch
              %461 = sbr.rel target = $region110
            $region109: #{tpu_custom_call.1} parent=101 // pred_region
              %s463 = ssub.s32 256, 1
              loop: start=0, step=1, limit=1
              $region111: #{tpu_custom_call.1} parent=109 // loop_pre_header
                _
              $region112: #{tpu_custom_call.1} parent=109 // loop_header
                %s465 = sphi 0, %s469
                %p466 = scmp.ge.s32.totalorder %s465, 1
                %s470 = sphi %s455, %s455
                %s471 = sphi %s449, %s449
              $region113: #{tpu_custom_call.1} parent=109 // loop_header_branch
                %468 = sbr.rel (%p466) target = $region117
              $region114: #{tpu_custom_call.1} parent=109 // loop_body
                %v472 = vld [vmem:[%s470] sm:%s463]
                %473 = vst [vmem:[%s471] sm:%s463] %v472
                %v474 = vld [vmem:[%s470 + $0x10] sm:%s463]
                %475 = vst [vmem:[%s471 + $0x8] sm:%s463] %v474
                %v476 = vld [vmem:[%s470 + $0x20] sm:%s463]
                %477 = vst [vmem:[%s471 + $0x10] sm:%s463] %v476
                %v478 = vld [vmem:[%s470 + $0x30] sm:%s463]
                %479 = vst [vmem:[%s471 + $0x18] sm:%s463] %v478
              $region115: #{tpu_custom_call.1} parent=109 // loop_footer
                %s469 = sadd.s32 1, %s465
              $region116: #{tpu_custom_call.1} parent=109 // loop_footer_branch
                %464 = sbr.rel target = $region112
              $region117: #{tpu_custom_call.1} parent=109 // loop_exit
                _
            $region110: #{tpu_custom_call.1} parent=101 // pred_fallthru
              _
          $region102: #{tpu_custom_call.1} parent=97 // pred_fallthru
            _
          %500 = vnop
        $region98: #{tpu_custom_call.1} parent=55 // pred_fallthru
          _
      $region56: #{tpu_custom_call.1} parent=5 // pred_fallthru
        _
      %p501 = scmp.le.s32.totalorder 1, %s21
      %p502 = scmp.lt.s32.totalorder %s21, 9
      %p503 = pnand %p501, %p502
      %p504 = pneg %p503
      // Predicated region
      $region133: #{tpu_custom_call.1} parent=5 // pred_check
        _
      $region134: #{tpu_custom_call.1} parent=5 // pred_check_branch
        %506 = sbr.rel (%p503) target = $region136
      $region135: #{tpu_custom_call.1} parent=5 // pred_region
        %s507 = ssub.s32 %s21, 1
        %s508 = sand.u32 %s55, 1
        %s509 = sand.u32 %s55, 1
        %s510 = smul.addr %s509, 32
        %s511 = scalar_lea.vmem [#allocation3], %s510
        // Predicated region
        $region137: #{tpu_custom_call.1} parent=135 // pred_check
          %p512 = pneg %p68
        $region138: #{tpu_custom_call.1} parent=135 // pred_check_branch
          %514 = sbr.rel (%p512) target = $region140
        $region139: #{tpu_custom_call.1} parent=135 // pred_region
          _
        $region140: #{tpu_custom_call.1} parent=135 // pred_fallthru
          _
        %s515 = sand.u32 %s87, 1
        %s516 = sand.u32 %s87, 1
        %s517 = smul.addr %s516, 32
        %s518 = scalar_lea.vmem [#allocation4], %s517
        // Predicated region
        $region141: #{tpu_custom_call.1} parent=135 // pred_check
          %p519 = pneg %p100
        $region142: #{tpu_custom_call.1} parent=135 // pred_check_branch
          %521 = sbr.rel (%p519) target = $region144
        $region143: #{tpu_custom_call.1} parent=135 // pred_region
          _
        $region144: #{tpu_custom_call.1} parent=135 // pred_fallthru
          _
        %s522 = sand.u32 %s55, 1
        %s523 = sand.u32 %s55, 1
        %s524 = smul.addr %s523, 32
        %s525 = scalar_lea.vmem [#allocation3], %s524
        %p526 = pneg %p68
        %p527 = pneg %p65
        %s528 = sand.u32 %s87, 1
        %s529 = sand.u32 %s87, 1
        %s530 = smul.addr %s529, 32
        %s531 = scalar_lea.vmem [#allocation4], %s530
        %p532 = pneg %p100
        %p533 = pneg %p97
        %p534 = pneg %p121
        %p535 = pneg %p118
        %p536 = pneg %p142
        %p537 = pneg %p139
        %p538 = pneg %p163
        %p539 = pneg %p160
        %p540 = pneg %p184
        %p541 = pneg %p181
        %p542 = pneg %p205
        %p543 = pneg %p202
        %p544 = pneg %p226
        %p545 = pneg %p223
        %p546 = pneg %p247
        %p547 = pneg %p244
        %p548 = pneg %p268
        %p549 = pneg %p265
        %p550 = pneg %p289
        %p551 = pneg %p286
        %p552 = pneg %p310
        %p553 = pneg %p307
        %p554 = pneg %p338
        %p555 = pneg %p335
        %s556 = sand.u32 %s325, 1
        %s557 = scalar_lea.sflag [#allocation6], %s556
        %s558 = sand.u32 %s325, 1
        %s559 = smul.addr %s558, 8
        %s560 = scalar_lea.vmem [#allocation5], %s559
        %p561 = scmp.lt.s32.totalorder %s33, %s32
        %s562 = scalar_select %p561, %s33, %s32
        %p563 = scmp.eq.s32.totalorder %s33, 0
        // Predicated region
        $region145: #{tpu_custom_call.1} parent=135 // pred_check
          %p564 = pneg %p563
        $region146: #{tpu_custom_call.1} parent=135 // pred_check_branch
          %566 = sbr.rel (%p564) target = $region148
        $region147: #{tpu_custom_call.1} parent=135 // pred_region
          %vm567 = vcmask 64512
          %568 = vst.msk [vmem:[#allocation2] sm:$0xff] %vm567, 0.0
          %569 = vst.msk [vmem:[#allocation2 + $0x8] sm:$0xff] %vm567, 0.0
          %570 = vst.msk [vmem:[#allocation2 + $0x10] sm:$0xff] %vm567, 0.0
          %571 = vst.msk [vmem:[#allocation2 + $0x18] sm:$0xff] %vm567, 0.0
        $region148: #{tpu_custom_call.1} parent=135 // pred_fallthru
          _
        %p572 = scmp.le.s32.totalorder %s33, %s32
        // Predicated region
        $region149: #{tpu_custom_call.1} parent=135 // pred_check
          %p573 = pneg %p572
        $region150: #{tpu_custom_call.1} parent=135 // pred_check_branch
          %575 = sbr.rel (%p573) target = $region152
        $region151: #{tpu_custom_call.1} parent=135 // pred_region
          %v576 = vld [vmem:[%s511] sm:$0xff]
          %v577 = vld [vmem:[%s511 + $0x8] sm:$0xff]
          %v578 = vld [vmem:[%s511 + $0x10] sm:$0xff]
          %v579 = vld [vmem:[%s511 + $0x18] sm:$0xff]
          %v580 = vld [vmem:[%s518] sm:$0xff]
          %v581 = vld [vmem:[%s518 + $0x8] sm:$0xff]
          %v582 = vld [vmem:[%s518 + $0x10] sm:$0xff]
          %v583 = vld [vmem:[%s518 + $0x18] sm:$0xff]
          %v584 = vld [vmem:[%s2] sm:$0xff]
          %v585 = vld [vmem:[%s2 + $0x8] sm:$0xff]
          %v586 = vld [vmem:[%s2 + $0x10] sm:$0xff]
          %v587 = vld [vmem:[%s2 + $0x18] sm:$0xff]
          %v588 = vld [vmem:[%s3] sm:$0x1]
          %v589 = vld [vmem:[%s3 + $0x1] sm:$0x1]
          %v590 = vld [vmem:[%s3 + $0x2] sm:$0x1]
          %v591 = vld [vmem:[%s3 + $0x3] sm:$0x1]
          %v596 = vlaneseq
          %v597 = vshrl.u32 %v596, 7
          %v598 = vsub.s32 0, %v597
          %v599 = vrot.slane %v588, %v598
          %v600 = vlaneseq
          %v601 = vshrl.u32 %v600, 7
          %v602 = vsub.s32 0, %v601
          %v603 = vrot.slane %v589, %v602
          %v604 = vlaneseq
          %v605 = vshrl.u32 %v604, 7
          %v606 = vsub.s32 0, %v605
          %v607 = vrot.slane %v590, %v606
          %v608 = vlaneseq
          %v609 = vshrl.u32 %v608, 7
          %v610 = vsub.s32 0, %v609
          %v611 = vrot.slane %v591, %v610
          %vm616 = vcmask 64512
          %v618 = vsel %vm616, %v576, 0
          %620 = vmatprep.subr.mxu0 0.0
          %621 = vmatpush1.msra.mxu0 0.0
          %622 = vmatprep.subr.mxu0 0.0
          %623 = vmatpush1.msra.mxu0 0.0
          %624 = vmatprep.subr.mxu0 0.0
          %625 = vmatpush1.msra.mxu0 0.0
          %626 = vmatprep.subr.mxu0 0.0
          %627 = vmatpush1.msra.mxu0 0.0
          %628 = vmatprep.subr.mxu0 0.0
          %629 = vmatpush1.msra.mxu0 0.0
          %630 = vmatprep.subr.mxu0 0.0
          %631 = vmatpush1.msra.mxu0 0.0
          %632 = vmatprep.subr.mxu0 0.0
          %633 = vmatpush1.msra.mxu0 0.0
          %634 = vmatprep.subr.mxu0 0.0
          %635 = vmatpush1.msra.mxu0 0.0
          %636 = vmatprep.subr.mxu0 0.0
          %637 = vmatpush1.msra.mxu0 0.0
          %638 = vmatprep.subr.mxu0 0.0
          %639 = vmatpush1.msra.mxu0 0.0
          %640 = vmatprep.subr.mxu0 0.0
          %641 = vmatpush1.msra.mxu0 0.0
          %642 = vmatprep.subr.mxu0 0.0
          %643 = vmatpush1.msra.mxu0 0.0
          %644 = vmatprep.subr.mxu0 0.0
          %645 = vmatpush1.msra.mxu0 0.0
          %646 = vmatprep.subr.mxu0 0.0
          %647 = vmatpush1.msra.mxu0 0.0
          %648 = vmatprep.subr.mxu0 0.0
          %649 = vmatpush1.msra.mxu0 0.0
          %650 = vmatprep.subr.mxu0 0.0
          %651 = vmatpush1.msra.mxu0 %v584
          %652 = vmatprep.subr.mxu0 0.0
          %653 = vmatpush2.msra.mxu0 0.0
          %654 = vmatprep.subr.mxu0 0.0
          %655 = vmatpush2.msra.mxu0 0.0
          %656 = vmatprep.subr.mxu0 0.0
          %657 = vmatpush2.msra.mxu0 0.0
          %658 = vmatprep.subr.mxu0 0.0
          %659 = vmatpush2.msra.mxu0 0.0
          %660 = vmatprep.subr.mxu0 0.0
          %661 = vmatpush2.msra.mxu0 0.0
          %662 = vmatprep.subr.mxu0 0.0
          %663 = vmatpush2.msra.mxu0 0.0
          %664 = vmatprep.subr.mxu0 0.0
          %665 = vmatpush2.msra.mxu0 0.0
          %666 = vmatprep.subr.mxu0 0.0
          %667 = vmatpush2.msra.mxu0 0.0
          %668 = vmatprep.subr.mxu0 0.0
          %669 = vmatpush2.msra.mxu0 0.0
          %670 = vmatprep.subr.mxu0 0.0
          %671 = vmatpush2.msra.mxu0 0.0
          %672 = vmatprep.subr.mxu0 0.0
          %673 = vmatpush2.msra.mxu0 0.0
          %674 = vmatprep.subr.mxu0 0.0
          %675 = vmatpush2.msra.mxu0 0.0
          %676 = vmatprep.subr.mxu0 0.0
          %677 = vmatpush2.msra.mxu0 0.0
          %678 = vmatprep.subr.mxu0 0.0
          %679 = vmatpush2.msra.mxu0 0.0
          %680 = vmatprep.subr.mxu0 0.0
          %681 = vmatpush2.msra.mxu0 0.0
          %682 = vmatprep.subr.mxu0 0.0
          %683 = vmatpush2.msra.mxu0 0.0
          %684 = vmatprep.mubr.f32.mxu0 0.0
          %685 = vmatmul.mubr.f32.gmra.mxu0 %v618
          %v686 = vpop.f32.mrf.mxu0
          %v687 = vadd.f32 %v599, %v686
          %v688 = vpop.f32.mrf.mxu0
          %689 = vdwg.mxu0
          %v691 = vsel %vm616, %v577, 0
          %693 = vmatprep.subr.mxu0 0.0
          %694 = vmatpush1.msra.mxu0 0.0
          %695 = vmatprep.subr.mxu0 0.0
          %696 = vmatpush1.msra.mxu0 0.0
          %697 = vmatprep.subr.mxu0 0.0
          %698 = vmatpush1.msra.mxu0 0.0
          %699 = vmatprep.subr.mxu0 0.0
          %700 = vmatpush1.msra.mxu0 0.0
          %701 = vmatprep.subr.mxu0 0.0
          %702 = vmatpush1.msra.mxu0 0.0
          %703 = vmatprep.subr.mxu0 0.0
          %704 = vmatpush1.msra.mxu0 0.0
          %705 = vmatprep.subr.mxu0 0.0
          %706 = vmatpush1.msra.mxu0 0.0
          %707 = vmatprep.subr.mxu0 0.0
          %708 = vmatpush1.msra.mxu0 0.0
          %709 = vmatprep.subr.mxu0 0.0
          %710 = vmatpush1.msra.mxu0 0.0
          %711 = vmatprep.subr.mxu0 0.0
          %712 = vmatpush1.msra.mxu0 0.0
          %713 = vmatprep.subr.mxu0 0.0
          %714 = vmatpush1.msra.mxu0 0.0
          %715 = vmatprep.subr.mxu0 0.0
          %716 = vmatpush1.msra.mxu0 0.0
          %717 = vmatprep.subr.mxu0 0.0
          %718 = vmatpush1.msra.mxu0 0.0
          %719 = vmatprep.subr.mxu0 0.0
          %720 = vmatpush1.msra.mxu0 0.0
          %721 = vmatprep.subr.mxu0 0.0
          %722 = vmatpush1.msra.mxu0 0.0
          %723 = vmatprep.subr.mxu0 0.0
          %724 = vmatpush1.msra.mxu0 %v585
          %725 = vmatprep.subr.mxu0 0.0
          %726 = vmatpush2.msra.mxu0 0.0
          %727 = vmatprep.subr.mxu0 0.0
          %728 = vmatpush2.msra.mxu0 0.0
          %729 = vmatprep.subr.mxu0 0.0
          %730 = vmatpush2.msra.mxu0 0.0
          %731 = vmatprep.subr.mxu0 0.0
          %732 = vmatpush2.msra.mxu0 0.0
          %733 = vmatprep.subr.mxu0 0.0
          %734 = vmatpush2.msra.mxu0 0.0
          %735 = vmatprep.subr.mxu0 0.0
          %736 = vmatpush2.msra.mxu0 0.0
          %737 = vmatprep.subr.mxu0 0.0
          %738 = vmatpush2.msra.mxu0 0.0
          %739 = vmatprep.subr.mxu0 0.0
          %740 = vmatpush2.msra.mxu0 0.0
          %741 = vmatprep.subr.mxu0 0.0
          %742 = vmatpush2.msra.mxu0 0.0
          %743 = vmatprep.subr.mxu0 0.0
          %744 = vmatpush2.msra.mxu0 0.0
          %745 = vmatprep.subr.mxu0 0.0
          %746 = vmatpush2.msra.mxu0 0.0
          %747 = vmatprep.subr.mxu0 0.0
          %748 = vmatpush2.msra.mxu0 0.0
          %749 = vmatprep.subr.mxu0 0.0
          %750 = vmatpush2.msra.mxu0 0.0
          %751 = vmatprep.subr.mxu0 0.0
          %752 = vmatpush2.msra.mxu0 0.0
          %753 = vmatprep.subr.mxu0 0.0
          %754 = vmatpush2.msra.mxu0 0.0
          %755 = vmatprep.subr.mxu0 0.0
          %756 = vmatpush2.msra.mxu0 0.0
          %757 = vmatprep.mubr.f32.mxu0 0.0
          %758 = vmatmul.mubr.f32.gmra.mxu0 %v691
          %v759 = vpop.f32.mrf.mxu0
          %v760 = vadd.f32 %v603, %v759
          %v761 = vpop.f32.mrf.mxu0
          %762 = vdwg.mxu0
          %v764 = vsel %vm616, %v578, 0
          %766 = vmatprep.subr.mxu0 0.0
          %767 = vmatpush1.msra.mxu0 0.0
          %768 = vmatprep.subr.mxu0 0.0
          %769 = vmatpush1.msra.mxu0 0.0
          %770 = vmatprep.subr.mxu0 0.0
          %771 = vmatpush1.msra.mxu0 0.0
          %772 = vmatprep.subr.mxu0 0.0
          %773 = vmatpush1.msra.mxu0 0.0
          %774 = vmatprep.subr.mxu0 0.0
          %775 = vmatpush1.msra.mxu0 0.0
          %776 = vmatprep.subr.mxu0 0.0
          %777 = vmatpush1.msra.mxu0 0.0
          %778 = vmatprep.subr.mxu0 0.0
          %779 = vmatpush1.msra.mxu0 0.0
          %780 = vmatprep.subr.mxu0 0.0
          %781 = vmatpush1.msra.mxu0 0.0
          %782 = vmatprep.subr.mxu0 0.0
          %783 = vmatpush1.msra.mxu0 0.0
          %784 = vmatprep.subr.mxu0 0.0
          %785 = vmatpush1.msra.mxu0 0.0
          %786 = vmatprep.subr.mxu0 0.0
          %787 = vmatpush1.msra.mxu0 0.0
          %788 = vmatprep.subr.mxu0 0.0
          %789 = vmatpush1.msra.mxu0 0.0
          %790 = vmatprep.subr.mxu0 0.0
          %791 = vmatpush1.msra.mxu0 0.0
          %792 = vmatprep.subr.mxu0 0.0
          %793 = vmatpush1.msra.mxu0 0.0
          %794 = vmatprep.subr.mxu0 0.0
          %795 = vmatpush1.msra.mxu0 0.0
          %796 = vmatprep.subr.mxu0 0.0
          %797 = vmatpush1.msra.mxu0 %v586
          %798 = vmatprep.subr.mxu0 0.0
          %799 = vmatpush2.msra.mxu0 0.0
          %800 = vmatprep.subr.mxu0 0.0
          %801 = vmatpush2.msra.mxu0 0.0
          %802 = vmatprep.subr.mxu0 0.0
          %803 = vmatpush2.msra.mxu0 0.0
          %804 = vmatprep.subr.mxu0 0.0
          %805 = vmatpush2.msra.mxu0 0.0
          %806 = vmatprep.subr.mxu0 0.0
          %807 = vmatpush2.msra.mxu0 0.0
          %808 = vmatprep.subr.mxu0 0.0
          %809 = vmatpush2.msra.mxu0 0.0
          %810 = vmatprep.subr.mxu0 0.0
          %811 = vmatpush2.msra.mxu0 0.0
          %812 = vmatprep.subr.mxu0 0.0
          %813 = vmatpush2.msra.mxu0 0.0
          %814 = vmatprep.subr.mxu0 0.0
          %815 = vmatpush2.msra.mxu0 0.0
          %816 = vmatprep.subr.mxu0 0.0
          %817 = vmatpush2.msra.mxu0 0.0
          %818 = vmatprep.subr.mxu0 0.0
          %819 = vmatpush2.msra.mxu0 0.0
          %820 = vmatprep.subr.mxu0 0.0
          %821 = vmatpush2.msra.mxu0 0.0
          %822 = vmatprep.subr.mxu0 0.0
          %823 = vmatpush2.msra.mxu0 0.0
          %824 = vmatprep.subr.mxu0 0.0
          %825 = vmatpush2.msra.mxu0 0.0
          %826 = vmatprep.subr.mxu0 0.0
          %827 = vmatpush2.msra.mxu0 0.0
          %828 = vmatprep.subr.mxu0 0.0
          %829 = vmatpush2.msra.mxu0 0.0
          %830 = vmatprep.mubr.f32.mxu0 0.0
          %831 = vmatmul.mubr.f32.gmra.mxu0 %v764
          %v832 = vpop.f32.mrf.mxu0
          %v833 = vadd.f32 %v607, %v832
          %v834 = vpop.f32.mrf.mxu0
          %835 = vdwg.mxu0
          %v837 = vsel %vm616, %v579, 0
          %839 = vmatprep.subr.mxu0 0.0
          %840 = vmatpush1.msra.mxu0 0.0
          %841 = vmatprep.subr.mxu0 0.0
          %842 = vmatpush1.msra.mxu0 0.0
          %843 = vmatprep.subr.mxu0 0.0
          %844 = vmatpush1.msra.mxu0 0.0
          %845 = vmatprep.subr.mxu0 0.0
          %846 = vmatpush1.msra.mxu0 0.0
          %847 = vmatprep.subr.mxu0 0.0
          %848 = vmatpush1.msra.mxu0 0.0
          %849 = vmatprep.subr.mxu0 0.0
          %850 = vmatpush1.msra.mxu0 0.0
          %851 = vmatprep.subr.mxu0 0.0
          %852 = vmatpush1.msra.mxu0 0.0
          %853 = vmatprep.subr.mxu0 0.0
          %854 = vmatpush1.msra.mxu0 0.0
          %855 = vmatprep.subr.mxu0 0.0
          %856 = vmatpush1.msra.mxu0 0.0
          %857 = vmatprep.subr.mxu0 0.0
          %858 = vmatpush1.msra.mxu0 0.0
          %859 = vmatprep.subr.mxu0 0.0
          %860 = vmatpush1.msra.mxu0 0.0
          %861 = vmatprep.subr.mxu0 0.0
          %862 = vmatpush1.msra.mxu0 0.0
          %863 = vmatprep.subr.mxu0 0.0
          %864 = vmatpush1.msra.mxu0 0.0
          %865 = vmatprep.subr.mxu0 0.0
          %866 = vmatpush1.msra.mxu0 0.0
          %867 = vmatprep.subr.mxu0 0.0
          %868 = vmatpush1.msra.mxu0 0.0
          %869 = vmatprep.subr.mxu0 0.0
          %870 = vmatpush1.msra.mxu0 %v587
          %871 = vmatprep.subr.mxu0 0.0
          %872 = vmatpush2.msra.mxu0 0.0
          %873 = vmatprep.subr.mxu0 0.0
          %874 = vmatpush2.msra.mxu0 0.0
          %875 = vmatprep.subr.mxu0 0.0
          %876 = vmatpush2.msra.mxu0 0.0
          %877 = vmatprep.subr.mxu0 0.0
          %878 = vmatpush2.msra.mxu0 0.0
          %879 = vmatprep.subr.mxu0 0.0
          %880 = vmatpush2.msra.mxu0 0.0
          %881 = vmatprep.subr.mxu0 0.0
          %882 = vmatpush2.msra.mxu0 0.0
          %883 = vmatprep.subr.mxu0 0.0
          %884 = vmatpush2.msra.mxu0 0.0
          %885 = vmatprep.subr.mxu0 0.0
          %886 = vmatpush2.msra.mxu0 0.0
          %887 = vmatprep.subr.mxu0 0.0
          %888 = vmatpush2.msra.mxu0 0.0
          %889 = vmatprep.subr.mxu0 0.0
          %890 = vmatpush2.msra.mxu0 0.0
          %891 = vmatprep.subr.mxu0 0.0
          %892 = vmatpush2.msra.mxu0 0.0
          %893 = vmatprep.subr.mxu0 0.0
          %894 = vmatpush2.msra.mxu0 0.0
          %895 = vmatprep.subr.mxu0 0.0
          %896 = vmatpush2.msra.mxu0 0.0
          %897 = vmatprep.subr.mxu0 0.0
          %898 = vmatpush2.msra.mxu0 0.0
          %899 = vmatprep.subr.mxu0 0.0
          %900 = vmatpush2.msra.mxu0 0.0
          %901 = vmatprep.subr.mxu0 0.0
          %902 = vmatpush2.msra.mxu0 0.0
          %903 = vmatprep.mubr.f32.mxu0 0.0
          %904 = vmatmul.mubr.f32.gmra.mxu0 %v837
          %v905 = vpop.f32.mrf.mxu0
          %v906 = vadd.f32 %v611, %v905
          %v907 = vpop.f32.mrf.mxu0
          %908 = vdwg.mxu0
          %v909 = vld [vmem:[%s4] sm:$0xff]
          %v910 = vld [vmem:[%s4 + $0x8] sm:$0xff]
          %v911 = vld [vmem:[%s4 + $0x10] sm:$0xff]
          %v912 = vld [vmem:[%s4 + $0x18] sm:$0xff]
          %v913 = vld [vmem:[%s5] sm:$0x1]
          %v914 = vld [vmem:[%s5 + $0x1] sm:$0x1]
          %v915 = vld [vmem:[%s5 + $0x2] sm:$0x1]
          %v916 = vld [vmem:[%s5 + $0x3] sm:$0x1]
          %v921 = vlaneseq
          %v922 = vshrl.u32 %v921, 7
          %v923 = vsub.s32 0, %v922
          %v924 = vrot.slane %v913, %v923
          %v925 = vlaneseq
          %v926 = vshrl.u32 %v925, 7
          %v927 = vsub.s32 0, %v926
          %v928 = vrot.slane %v914, %v927
          %v929 = vlaneseq
          %v930 = vshrl.u32 %v929, 7
          %v931 = vsub.s32 0, %v930
          %v932 = vrot.slane %v915, %v931
          %v933 = vlaneseq
          %v934 = vshrl.u32 %v933, 7
          %v935 = vsub.s32 0, %v934
          %v936 = vrot.slane %v916, %v935
          %v942 = vsel %vm616, %v580, 0
          %944 = vmatprep.subr.mxu0 0.0
          %945 = vmatpush1.msra.mxu0 0.0
          %946 = vmatprep.subr.mxu0 0.0
          %947 = vmatpush1.msra.mxu0 0.0
          %948 = vmatprep.subr.mxu0 0.0
          %949 = vmatpush1.msra.mxu0 0.0
          %950 = vmatprep.subr.mxu0 0.0
          %951 = vmatpush1.msra.mxu0 0.0
          %952 = vmatprep.subr.mxu0 0.0
          %953 = vmatpush1.msra.mxu0 0.0
          %954 = vmatprep.subr.mxu0 0.0
          %955 = vmatpush1.msra.mxu0 0.0
          %956 = vmatprep.subr.mxu0 0.0
          %957 = vmatpush1.msra.mxu0 0.0
          %958 = vmatprep.subr.mxu0 0.0
          %959 = vmatpush1.msra.mxu0 0.0
          %960 = vmatprep.subr.mxu0 0.0
          %961 = vmatpush1.msra.mxu0 0.0
          %962 = vmatprep.subr.mxu0 0.0
          %963 = vmatpush1.msra.mxu0 0.0
          %964 = vmatprep.subr.mxu0 0.0
          %965 = vmatpush1.msra.mxu0 0.0
          %966 = vmatprep.subr.mxu0 0.0
          %967 = vmatpush1.msra.mxu0 0.0
          %968 = vmatprep.subr.mxu0 0.0
          %969 = vmatpush1.msra.mxu0 0.0
          %970 = vmatprep.subr.mxu0 0.0
          %971 = vmatpush1.msra.mxu0 0.0
          %972 = vmatprep.subr.mxu0 0.0
          %973 = vmatpush1.msra.mxu0 0.0
          %974 = vmatprep.subr.mxu0 0.0
          %975 = vmatpush1.msra.mxu0 %v909
          %976 = vmatprep.subr.mxu0 0.0
          %977 = vmatpush2.msra.mxu0 0.0
          %978 = vmatprep.subr.mxu0 0.0
          %979 = vmatpush2.msra.mxu0 0.0
          %980 = vmatprep.subr.mxu0 0.0
          %981 = vmatpush2.msra.mxu0 0.0
          %982 = vmatprep.subr.mxu0 0.0
          %983 = vmatpush2.msra.mxu0 0.0
          %984 = vmatprep.subr.mxu0 0.0
          %985 = vmatpush2.msra.mxu0 0.0
          %986 = vmatprep.subr.mxu0 0.0
          %987 = vmatpush2.msra.mxu0 0.0
          %988 = vmatprep.subr.mxu0 0.0
          %989 = vmatpush2.msra.mxu0 0.0
          %990 = vmatprep.subr.mxu0 0.0
          %991 = vmatpush2.msra.mxu0 0.0
          %992 = vmatprep.subr.mxu0 0.0
          %993 = vmatpush2.msra.mxu0 0.0
          %994 = vmatprep.subr.mxu0 0.0
          %995 = vmatpush2.msra.mxu0 0.0
          %996 = vmatprep.subr.mxu0 0.0
          %997 = vmatpush2.msra.mxu0 0.0
          %998 = vmatprep.subr.mxu0 0.0
          %999 = vmatpush2.msra.mxu0 0.0
          %1000 = vmatprep.subr.mxu0 0.0
          %1001 = vmatpush2.msra.mxu0 0.0
          %1002 = vmatprep.subr.mxu0 0.0
          %1003 = vmatpush2.msra.mxu0 0.0
          %1004 = vmatprep.subr.mxu0 0.0
          %1005 = vmatpush2.msra.mxu0 0.0
          %1006 = vmatprep.subr.mxu0 0.0
          %1007 = vmatpush2.msra.mxu0 0.0
          %1008 = vmatprep.mubr.f32.mxu0 0.0
          %1009 = vmatmul.mubr.f32.gmra.mxu0 %v942
          %v1010 = vpop.f32.mrf.mxu0
          %v1011 = vadd.f32 %v924, %v1010
          %v1012 = vpop.f32.mrf.mxu0
          %1013 = vdwg.mxu0
          %v1015 = vsel %vm616, %v581, 0
          %1017 = vmatprep.subr.mxu0 0.0
          %1018 = vmatpush1.msra.mxu0 0.0
          %1019 = vmatprep.subr.mxu0 0.0
          %1020 = vmatpush1.msra.mxu0 0.0
          %1021 = vmatprep.subr.mxu0 0.0
          %1022 = vmatpush1.msra.mxu0 0.0
          %1023 = vmatprep.subr.mxu0 0.0
          %1024 = vmatpush1.msra.mxu0 0.0
          %1025 = vmatprep.subr.mxu0 0.0
          %1026 = vmatpush1.msra.mxu0 0.0
          %1027 = vmatprep.subr.mxu0 0.0
          %1028 = vmatpush1.msra.mxu0 0.0
          %1029 = vmatprep.subr.mxu0 0.0
          %1030 = vmatpush1.msra.mxu0 0.0
          %1031 = vmatprep.subr.mxu0 0.0
          %1032 = vmatpush1.msra.mxu0 0.0
          %1033 = vmatprep.subr.mxu0 0.0
          %1034 = vmatpush1.msra.mxu0 0.0
          %1035 = vmatprep.subr.mxu0 0.0
          %1036 = vmatpush1.msra.mxu0 0.0
          %1037 = vmatprep.subr.mxu0 0.0
          %1038 = vmatpush1.msra.mxu0 0.0
          %1039 = vmatprep.subr.mxu0 0.0
          %1040 = vmatpush1.msra.mxu0 0.0
          %1041 = vmatprep.subr.mxu0 0.0
          %1042 = vmatpush1.msra.mxu0 0.0
          %1043 = vmatprep.subr.mxu0 0.0
          %1044 = vmatpush1.msra.mxu0 0.0
          %1045 = vmatprep.subr.mxu0 0.0
          %1046 = vmatpush1.msra.mxu0 0.0
          %1047 = vmatprep.subr.mxu0 0.0
          %1048 = vmatpush1.msra.mxu0 %v910
          %1049 = vmatprep.subr.mxu0 0.0
          %1050 = vmatpush2.msra.mxu0 0.0
          %1051 = vmatprep.subr.mxu0 0.0
          %1052 = vmatpush2.msra.mxu0 0.0
          %1053 = vmatprep.subr.mxu0 0.0
          %1054 = vmatpush2.msra.mxu0 0.0
          %1055 = vmatprep.subr.mxu0 0.0
          %1056 = vmatpush2.msra.mxu0 0.0
          %1057 = vmatprep.subr.mxu0 0.0
          %1058 = vmatpush2.msra.mxu0 0.0
          %1059 = vmatprep.subr.mxu0 0.0
          %1060 = vmatpush2.msra.mxu0 0.0
          %1061 = vmatprep.subr.mxu0 0.0
          %1062 = vmatpush2.msra.mxu0 0.0
          %1063 = vmatprep.subr.mxu0 0.0
          %1064 = vmatpush2.msra.mxu0 0.0
          %1065 = vmatprep.subr.mxu0 0.0
          %1066 = vmatpush2.msra.mxu0 0.0
          %1067 = vmatprep.subr.mxu0 0.0
          %1068 = vmatpush2.msra.mxu0 0.0
          %1069 = vmatprep.subr.mxu0 0.0
          %1070 = vmatpush2.msra.mxu0 0.0
          %1071 = vmatprep.subr.mxu0 0.0
          %1072 = vmatpush2.msra.mxu0 0.0
          %1073 = vmatprep.subr.mxu0 0.0
          %1074 = vmatpush2.msra.mxu0 0.0
          %1075 = vmatprep.subr.mxu0 0.0
          %1076 = vmatpush2.msra.mxu0 0.0
          %1077 = vmatprep.subr.mxu0 0.0
          %1078 = vmatpush2.msra.mxu0 0.0
          %1079 = vmatprep.subr.mxu0 0.0
          %1080 = vmatpush2.msra.mxu0 0.0
          %1081 = vmatprep.mubr.f32.mxu0 0.0
          %1082 = vmatmul.mubr.f32.gmra.mxu0 %v1015
          %v1083 = vpop.f32.mrf.mxu0
          %v1084 = vadd.f32 %v928, %v1083
          %v1085 = vpop.f32.mrf.mxu0
          %1086 = vdwg.mxu0
          %v1088 = vsel %vm616, %v582, 0
          %1090 = vmatprep.subr.mxu0 0.0
          %1091 = vmatpush1.msra.mxu0 0.0
          %1092 = vmatprep.subr.mxu0 0.0
          %1093 = vmatpush1.msra.mxu0 0.0
          %1094 = vmatprep.subr.mxu0 0.0
          %1095 = vmatpush1.msra.mxu0 0.0
          %1096 = vmatprep.subr.mxu0 0.0
          %1097 = vmatpush1.msra.mxu0 0.0
          %1098 = vmatprep.subr.mxu0 0.0
          %1099 = vmatpush1.msra.mxu0 0.0
          %1100 = vmatprep.subr.mxu0 0.0
          %1101 = vmatpush1.msra.mxu0 0.0
          %1102 = vmatprep.subr.mxu0 0.0
          %1103 = vmatpush1.msra.mxu0 0.0
          %1104 = vmatprep.subr.mxu0 0.0
          %1105 = vmatpush1.msra.mxu0 0.0
          %1106 = vmatprep.subr.mxu0 0.0
          %1107 = vmatpush1.msra.mxu0 0.0
          %1108 = vmatprep.subr.mxu0 0.0
          %1109 = vmatpush1.msra.mxu0 0.0
          %1110 = vmatprep.subr.mxu0 0.0
          %1111 = vmatpush1.msra.mxu0 0.0
          %1112 = vmatprep.subr.mxu0 0.0
          %1113 = vmatpush1.msra.mxu0 0.0
          %1114 = vmatprep.subr.mxu0 0.0
          %1115 = vmatpush1.msra.mxu0 0.0
          %1116 = vmatprep.subr.mxu0 0.0
          %1117 = vmatpush1.msra.mxu0 0.0
          %1118 = vmatprep.subr.mxu0 0.0
          %1119 = vmatpush1.msra.mxu0 0.0
          %1120 = vmatprep.subr.mxu0 0.0
          %1121 = vmatpush1.msra.mxu0 %v911
          %1122 = vmatprep.subr.mxu0 0.0
          %1123 = vmatpush2.msra.mxu0 0.0
          %1124 = vmatprep.subr.mxu0 0.0
          %1125 = vmatpush2.msra.mxu0 0.0
          %1126 = vmatprep.subr.mxu0 0.0
          %1127 = vmatpush2.msra.mxu0 0.0
          %1128 = vmatprep.subr.mxu0 0.0
          %1129 = vmatpush2.msra.mxu0 0.0
          %1130 = vmatprep.subr.mxu0 0.0
          %1131 = vmatpush2.msra.mxu0 0.0
          %1132 = vmatprep.subr.mxu0 0.0
          %1133 = vmatpush2.msra.mxu0 0.0
          %1134 = vmatprep.subr.mxu0 0.0
          %1135 = vmatpush2.msra.mxu0 0.0
          %1136 = vmatprep.subr.mxu0 0.0
          %1137 = vmatpush2.msra.mxu0 0.0
          %1138 = vmatprep.subr.mxu0 0.0
          %1139 = vmatpush2.msra.mxu0 0.0
          %1140 = vmatprep.subr.mxu0 0.0
          %1141 = vmatpush2.msra.mxu0 0.0
          %1142 = vmatprep.subr.mxu0 0.0
          %1143 = vmatpush2.msra.mxu0 0.0
          %1144 = vmatprep.subr.mxu0 0.0
          %1145 = vmatpush2.msra.mxu0 0.0
          %1146 = vmatprep.subr.mxu0 0.0
          %1147 = vmatpush2.msra.mxu0 0.0
          %1148 = vmatprep.subr.mxu0 0.0
          %1149 = vmatpush2.msra.mxu0 0.0
          %1150 = vmatprep.subr.mxu0 0.0
          %1151 = vmatpush2.msra.mxu0 0.0
          %1152 = vmatprep.subr.mxu0 0.0
          %1153 = vmatpush2.msra.mxu0 0.0
          %1154 = vmatprep.mubr.f32.mxu0 0.0
          %1155 = vmatmul.mubr.f32.gmra.mxu0 %v1088
          %v1156 = vpop.f32.mrf.mxu0
          %v1157 = vadd.f32 %v932, %v1156
          %v1158 = vpop.f32.mrf.mxu0
          %1159 = vdwg.mxu0
          %v1161 = vsel %vm616, %v583, 0
          %1163 = vmatprep.subr.mxu0 0.0
          %1164 = vmatpush1.msra.mxu0 0.0
          %1165 = vmatprep.subr.mxu0 0.0
          %1166 = vmatpush1.msra.mxu0 0.0
          %1167 = vmatprep.subr.mxu0 0.0
          %1168 = vmatpush1.msra.mxu0 0.0
          %1169 = vmatprep.subr.mxu0 0.0
          %1170 = vmatpush1.msra.mxu0 0.0
          %1171 = vmatprep.subr.mxu0 0.0
          %1172 = vmatpush1.msra.mxu0 0.0
          %1173 = vmatprep.subr.mxu0 0.0
          %1174 = vmatpush1.msra.mxu0 0.0
          %1175 = vmatprep.subr.mxu0 0.0
          %1176 = vmatpush1.msra.mxu0 0.0
          %1177 = vmatprep.subr.mxu0 0.0
          %1178 = vmatpush1.msra.mxu0 0.0
          %1179 = vmatprep.subr.mxu0 0.0
          %1180 = vmatpush1.msra.mxu0 0.0
          %1181 = vmatprep.subr.mxu0 0.0
          %1182 = vmatpush1.msra.mxu0 0.0
          %1183 = vmatprep.subr.mxu0 0.0
          %1184 = vmatpush1.msra.mxu0 0.0
          %1185 = vmatprep.subr.mxu0 0.0
          %1186 = vmatpush1.msra.mxu0 0.0
          %1187 = vmatprep.subr.mxu0 0.0
          %1188 = vmatpush1.msra.mxu0 0.0
          %1189 = vmatprep.subr.mxu0 0.0
          %1190 = vmatpush1.msra.mxu0 0.0
          %1191 = vmatprep.subr.mxu0 0.0
          %1192 = vmatpush1.msra.mxu0 0.0
          %1193 = vmatprep.subr.mxu0 0.0
          %1194 = vmatpush1.msra.mxu0 %v912
          %1195 = vmatprep.subr.mxu0 0.0
          %1196 = vmatpush2.msra.mxu0 0.0
          %1197 = vmatprep.subr.mxu0 0.0
          %1198 = vmatpush2.msra.mxu0 0.0
          %1199 = vmatprep.subr.mxu0 0.0
          %1200 = vmatpush2.msra.mxu0 0.0
          %1201 = vmatprep.subr.mxu0 0.0
          %1202 = vmatpush2.msra.mxu0 0.0
          %1203 = vmatprep.subr.mxu0 0.0
          %1204 = vmatpush2.msra.mxu0 0.0
          %1205 = vmatprep.subr.mxu0 0.0
          %1206 = vmatpush2.msra.mxu0 0.0
          %1207 = vmatprep.subr.mxu0 0.0
          %1208 = vmatpush2.msra.mxu0 0.0
          %1209 = vmatprep.subr.mxu0 0.0
          %1210 = vmatpush2.msra.mxu0 0.0
          %1211 = vmatprep.subr.mxu0 0.0
          %1212 = vmatpush2.msra.mxu0 0.0
          %1213 = vmatprep.subr.mxu0 0.0
          %1214 = vmatpush2.msra.mxu0 0.0
          %1215 = vmatprep.subr.mxu0 0.0
          %1216 = vmatpush2.msra.mxu0 0.0
          %1217 = vmatprep.subr.mxu0 0.0
          %1218 = vmatpush2.msra.mxu0 0.0
          %1219 = vmatprep.subr.mxu0 0.0
          %1220 = vmatpush2.msra.mxu0 0.0
          %1221 = vmatprep.subr.mxu0 0.0
          %1222 = vmatpush2.msra.mxu0 0.0
          %1223 = vmatprep.subr.mxu0 0.0
          %1224 = vmatpush2.msra.mxu0 0.0
          %1225 = vmatprep.subr.mxu0 0.0
          %1226 = vmatpush2.msra.mxu0 0.0
          %1227 = vmatprep.mubr.f32.mxu0 0.0
          %1228 = vmatmul.mubr.f32.gmra.mxu0 %v1161
          %v1229 = vpop.f32.mrf.mxu0
          %v1230 = vadd.f32 %v936, %v1229
          %v1231 = vpop.f32.mrf.mxu0
          %1232 = vdwg.mxu0
          %v1233 = vld [vmem:[%s6] sm:$0xff]
          %v1234 = vld [vmem:[%s6 + $0x8] sm:$0xff]
          %v1235 = vld [vmem:[%s6 + $0x10] sm:$0xff]
          %v1236 = vld [vmem:[%s6 + $0x18] sm:$0xff]
          %v1237 = vld [vmem:[%s7] sm:$0x1]
          %v1238 = vld [vmem:[%s7 + $0x1] sm:$0x1]
          %v1239 = vld [vmem:[%s7 + $0x2] sm:$0x1]
          %v1240 = vld [vmem:[%s7 + $0x3] sm:$0x1]
          %v1245 = vlaneseq
          %v1246 = vshrl.u32 %v1245, 7
          %v1247 = vsub.s32 0, %v1246
          %v1248 = vrot.slane %v1237, %v1247
          %v1249 = vlaneseq
          %v1250 = vshrl.u32 %v1249, 7
          %v1251 = vsub.s32 0, %v1250
          %v1252 = vrot.slane %v1238, %v1251
          %v1253 = vlaneseq
          %v1254 = vshrl.u32 %v1253, 7
          %v1255 = vsub.s32 0, %v1254
          %v1256 = vrot.slane %v1239, %v1255
          %v1257 = vlaneseq
          %v1258 = vshrl.u32 %v1257, 7
          %v1259 = vsub.s32 0, %v1258
          %v1260 = vrot.slane %v1240, %v1259
          %1265 = vmatprep.subr.mxu0 0.0
          %1266 = vmatpush1.msra.mxu0 0.0
          %1267 = vmatprep.subr.mxu0 0.0
          %1268 = vmatpush1.msra.mxu0 0.0
          %1269 = vmatprep.subr.mxu0 0.0
          %1270 = vmatpush1.msra.mxu0 0.0
          %1271 = vmatprep.subr.mxu0 0.0
          %1272 = vmatpush1.msra.mxu0 0.0
          %1273 = vmatprep.subr.mxu0 0.0
          %1274 = vmatpush1.msra.mxu0 0.0
          %1275 = vmatprep.subr.mxu0 0.0
          %1276 = vmatpush1.msra.mxu0 0.0
          %1277 = vmatprep.subr.mxu0 0.0
          %1278 = vmatpush1.msra.mxu0 0.0
          %1279 = vmatprep.subr.mxu0 0.0
          %1280 = vmatpush1.msra.mxu0 0.0
          %1281 = vmatprep.subr.mxu0 0.0
          %1282 = vmatpush1.msra.mxu0 0.0
          %1283 = vmatprep.subr.mxu0 0.0
          %1284 = vmatpush1.msra.mxu0 0.0
          %1285 = vmatprep.subr.mxu0 0.0
          %1286 = vmatpush1.msra.mxu0 0.0
          %1287 = vmatprep.subr.mxu0 0.0
          %1288 = vmatpush1.msra.mxu0 0.0
          %1289 = vmatprep.subr.mxu0 0.0
          %1290 = vmatpush1.msra.mxu0 0.0
          %1291 = vmatprep.subr.mxu0 0.0
          %1292 = vmatpush1.msra.mxu0 0.0
          %1293 = vmatprep.subr.mxu0 0.0
          %1294 = vmatpush1.msra.mxu0 0.0
          %1295 = vmatprep.subr.mxu0 0.0
          %1296 = vmatpush1.msra.mxu0 %v1233
          %1297 = vmatprep.subr.mxu0 0.0
          %1298 = vmatpush2.msra.mxu0 0.0
          %1299 = vmatprep.subr.mxu0 0.0
          %1300 = vmatpush2.msra.mxu0 0.0
          %1301 = vmatprep.subr.mxu0 0.0
          %1302 = vmatpush2.msra.mxu0 0.0
          %1303 = vmatprep.subr.mxu0 0.0
          %1304 = vmatpush2.msra.mxu0 0.0
          %1305 = vmatprep.subr.mxu0 0.0
          %1306 = vmatpush2.msra.mxu0 0.0
          %1307 = vmatprep.subr.mxu0 0.0
          %1308 = vmatpush2.msra.mxu0 0.0
          %1309 = vmatprep.subr.mxu0 0.0
          %1310 = vmatpush2.msra.mxu0 0.0
          %1311 = vmatprep.subr.mxu0 0.0
          %1312 = vmatpush2.msra.mxu0 0.0
          %1313 = vmatprep.subr.mxu0 0.0
          %1314 = vmatpush2.msra.mxu0 0.0
          %1315 = vmatprep.subr.mxu0 0.0
          %1316 = vmatpush2.msra.mxu0 0.0
          %1317 = vmatprep.subr.mxu0 0.0
          %1318 = vmatpush2.msra.mxu0 0.0
          %1319 = vmatprep.subr.mxu0 0.0
          %1320 = vmatpush2.msra.mxu0 0.0
          %1321 = vmatprep.subr.mxu0 0.0
          %1322 = vmatpush2.msra.mxu0 0.0
          %1323 = vmatprep.subr.mxu0 0.0
          %1324 = vmatpush2.msra.mxu0 0.0
          %1325 = vmatprep.subr.mxu0 0.0
          %1326 = vmatpush2.msra.mxu0 0.0
          %1327 = vmatprep.subr.mxu0 0.0
          %1328 = vmatpush2.msra.mxu0 0.0
          %1329 = vmatprep.mubr.f32.mxu0 0.0
          %1330 = vmatmul.mubr.f32.gmra.mxu0 %v942
          %v1331 = vpop.f32.mrf.mxu0
          %v1332 = vadd.f32 %v1248, %v1331
          %v1333 = vpop.f32.mrf.mxu0
          %1334 = vdwg.mxu0
          %1335 = vmatprep.subr.mxu0 0.0
          %1336 = vmatpush1.msra.mxu0 0.0
          %1337 = vmatprep.subr.mxu0 0.0
          %1338 = vmatpush1.msra.mxu0 0.0
          %1339 = vmatprep.subr.mxu0 0.0
          %1340 = vmatpush1.msra.mxu0 0.0
          %1341 = vmatprep.subr.mxu0 0.0
          %1342 = vmatpush1.msra.mxu0 0.0
          %1343 = vmatprep.subr.mxu0 0.0
          %1344 = vmatpush1.msra.mxu0 0.0
          %1345 = vmatprep.subr.mxu0 0.0
          %1346 = vmatpush1.msra.mxu0 0.0
          %1347 = vmatprep.subr.mxu0 0.0
          %1348 = vmatpush1.msra.mxu0 0.0
          %1349 = vmatprep.subr.mxu0 0.0
          %1350 = vmatpush1.msra.mxu0 0.0
          %1351 = vmatprep.subr.mxu0 0.0
          %1352 = vmatpush1.msra.mxu0 0.0
          %1353 = vmatprep.subr.mxu0 0.0
          %1354 = vmatpush1.msra.mxu0 0.0
          %1355 = vmatprep.subr.mxu0 0.0
          %1356 = vmatpush1.msra.mxu0 0.0
          %1357 = vmatprep.subr.mxu0 0.0
          %1358 = vmatpush1.msra.mxu0 0.0
          %1359 = vmatprep.subr.mxu0 0.0
          %1360 = vmatpush1.msra.mxu0 0.0
          %1361 = vmatprep.subr.mxu0 0.0
          %1362 = vmatpush1.msra.mxu0 0.0
          %1363 = vmatprep.subr.mxu0 0.0
          %1364 = vmatpush1.msra.mxu0 0.0
          %1365 = vmatprep.subr.mxu0 0.0
          %1366 = vmatpush1.msra.mxu0 %v1234
          %1367 = vmatprep.subr.mxu0 0.0
          %1368 = vmatpush2.msra.mxu0 0.0
          %1369 = vmatprep.subr.mxu0 0.0
          %1370 = vmatpush2.msra.mxu0 0.0
          %1371 = vmatprep.subr.mxu0 0.0
          %1372 = vmatpush2.msra.mxu0 0.0
          %1373 = vmatprep.subr.mxu0 0.0
          %1374 = vmatpush2.msra.mxu0 0.0
          %1375 = vmatprep.subr.mxu0 0.0
          %1376 = vmatpush2.msra.mxu0 0.0
          %1377 = vmatprep.subr.mxu0 0.0
          %1378 = vmatpush2.msra.mxu0 0.0
          %1379 = vmatprep.subr.mxu0 0.0
          %1380 = vmatpush2.msra.mxu0 0.0
          %1381 = vmatprep.subr.mxu0 0.0
          %1382 = vmatpush2.msra.mxu0 0.0
          %1383 = vmatprep.subr.mxu0 0.0
          %1384 = vmatpush2.msra.mxu0 0.0
          %1385 = vmatprep.subr.mxu0 0.0
          %1386 = vmatpush2.msra.mxu0 0.0
          %1387 = vmatprep.subr.mxu0 0.0
          %1388 = vmatpush2.msra.mxu0 0.0
          %1389 = vmatprep.subr.mxu0 0.0
          %1390 = vmatpush2.msra.mxu0 0.0
          %1391 = vmatprep.subr.mxu0 0.0
          %1392 = vmatpush2.msra.mxu0 0.0
          %1393 = vmatprep.subr.mxu0 0.0
          %1394 = vmatpush2.msra.mxu0 0.0
          %1395 = vmatprep.subr.mxu0 0.0
          %1396 = vmatpush2.msra.mxu0 0.0
          %1397 = vmatprep.subr.mxu0 0.0
          %1398 = vmatpush2.msra.mxu0 0.0
          %1399 = vmatprep.mubr.f32.mxu0 0.0
          %1400 = vmatmul.mubr.f32.gmra.mxu0 %v1015
          %v1401 = vpop.f32.mrf.mxu0
          %v1402 = vadd.f32 %v1252, %v1401
          %v1403 = vpop.f32.mrf.mxu0
          %1404 = vdwg.mxu0
          %1405 = vmatprep.subr.mxu0 0.0
          %1406 = vmatpush1.msra.mxu0 0.0
          %1407 = vmatprep.subr.mxu0 0.0
          %1408 = vmatpush1.msra.mxu0 0.0
          %1409 = vmatprep.subr.mxu0 0.0
          %1410 = vmatpush1.msra.mxu0 0.0
          %1411 = vmatprep.subr.mxu0 0.0
          %1412 = vmatpush1.msra.mxu0 0.0
          %1413 = vmatprep.subr.mxu0 0.0
          %1414 = vmatpush1.msra.mxu0 0.0
          %1415 = vmatprep.subr.mxu0 0.0
          %1416 = vmatpush1.msra.mxu0 0.0
          %1417 = vmatprep.subr.mxu0 0.0
          %1418 = vmatpush1.msra.mxu0 0.0
          %1419 = vmatprep.subr.mxu0 0.0
          %1420 = vmatpush1.msra.mxu0 0.0
          %1421 = vmatprep.subr.mxu0 0.0
          %1422 = vmatpush1.msra.mxu0 0.0
          %1423 = vmatprep.subr.mxu0 0.0
          %1424 = vmatpush1.msra.mxu0 0.0
          %1425 = vmatprep.subr.mxu0 0.0
          %1426 = vmatpush1.msra.mxu0 0.0
          %1427 = vmatprep.subr.mxu0 0.0
          %1428 = vmatpush1.msra.mxu0 0.0
          %1429 = vmatprep.subr.mxu0 0.0
          %1430 = vmatpush1.msra.mxu0 0.0
          %1431 = vmatprep.subr.mxu0 0.0
          %1432 = vmatpush1.msra.mxu0 0.0
          %1433 = vmatprep.subr.mxu0 0.0
          %1434 = vmatpush1.msra.mxu0 0.0
          %1435 = vmatprep.subr.mxu0 0.0
          %1436 = vmatpush1.msra.mxu0 %v1235
          %1437 = vmatprep.subr.mxu0 0.0
          %1438 = vmatpush2.msra.mxu0 0.0
          %1439 = vmatprep.subr.mxu0 0.0
          %1440 = vmatpush2.msra.mxu0 0.0
          %1441 = vmatprep.subr.mxu0 0.0
          %1442 = vmatpush2.msra.mxu0 0.0
          %1443 = vmatprep.subr.mxu0 0.0
          %1444 = vmatpush2.msra.mxu0 0.0
          %1445 = vmatprep.subr.mxu0 0.0
          %1446 = vmatpush2.msra.mxu0 0.0
          %1447 = vmatprep.subr.mxu0 0.0
          %1448 = vmatpush2.msra.mxu0 0.0
          %1449 = vmatprep.subr.mxu0 0.0
          %1450 = vmatpush2.msra.mxu0 0.0
          %1451 = vmatprep.subr.mxu0 0.0
          %1452 = vmatpush2.msra.mxu0 0.0
          %1453 = vmatprep.subr.mxu0 0.0
          %1454 = vmatpush2.msra.mxu0 0.0
          %1455 = vmatprep.subr.mxu0 0.0
          %1456 = vmatpush2.msra.mxu0 0.0
          %1457 = vmatprep.subr.mxu0 0.0
          %1458 = vmatpush2.msra.mxu0 0.0
          %1459 = vmatprep.subr.mxu0 0.0
          %1460 = vmatpush2.msra.mxu0 0.0
          %1461 = vmatprep.subr.mxu0 0.0
          %1462 = vmatpush2.msra.mxu0 0.0
          %1463 = vmatprep.subr.mxu0 0.0
          %1464 = vmatpush2.msra.mxu0 0.0
          %1465 = vmatprep.subr.mxu0 0.0
          %1466 = vmatpush2.msra.mxu0 0.0
          %1467 = vmatprep.subr.mxu0 0.0
          %1468 = vmatpush2.msra.mxu0 0.0
          %1469 = vmatprep.mubr.f32.mxu0 0.0
          %1470 = vmatmul.mubr.f32.gmra.mxu0 %v1088
          %v1471 = vpop.f32.mrf.mxu0
          %v1472 = vadd.f32 %v1256, %v1471
          %v1473 = vpop.f32.mrf.mxu0
          %1474 = vdwg.mxu0
          %1475 = vmatprep.subr.mxu0 0.0
          %1476 = vmatpush1.msra.mxu0 0.0
          %1477 = vmatprep.subr.mxu0 0.0
          %1478 = vmatpush1.msra.mxu0 0.0
          %1479 = vmatprep.subr.mxu0 0.0
          %1480 = vmatpush1.msra.mxu0 0.0
          %1481 = vmatprep.subr.mxu0 0.0
          %1482 = vmatpush1.msra.mxu0 0.0
          %1483 = vmatprep.subr.mxu0 0.0
          %1484 = vmatpush1.msra.mxu0 0.0
          %1485 = vmatprep.subr.mxu0 0.0
          %1486 = vmatpush1.msra.mxu0 0.0
          %1487 = vmatprep.subr.mxu0 0.0
          %1488 = vmatpush1.msra.mxu0 0.0
          %1489 = vmatprep.subr.mxu0 0.0
          %1490 = vmatpush1.msra.mxu0 0.0
          %1491 = vmatprep.subr.mxu0 0.0
          %1492 = vmatpush1.msra.mxu0 0.0
          %1493 = vmatprep.subr.mxu0 0.0
          %1494 = vmatpush1.msra.mxu0 0.0
          %1495 = vmatprep.subr.mxu0 0.0
          %1496 = vmatpush1.msra.mxu0 0.0
          %1497 = vmatprep.subr.mxu0 0.0
          %1498 = vmatpush1.msra.mxu0 0.0
          %1499 = vmatprep.subr.mxu0 0.0
          %1500 = vmatpush1.msra.mxu0 0.0
          %1501 = vmatprep.subr.mxu0 0.0
          %1502 = vmatpush1.msra.mxu0 0.0
          %1503 = vmatprep.subr.mxu0 0.0
          %1504 = vmatpush1.msra.mxu0 0.0
          %1505 = vmatprep.subr.mxu0 0.0
          %1506 = vmatpush1.msra.mxu0 %v1236
          %1507 = vmatprep.subr.mxu0 0.0
          %1508 = vmatpush2.msra.mxu0 0.0
          %1509 = vmatprep.subr.mxu0 0.0
          %1510 = vmatpush2.msra.mxu0 0.0
          %1511 = vmatprep.subr.mxu0 0.0
          %1512 = vmatpush2.msra.mxu0 0.0
          %1513 = vmatprep.subr.mxu0 0.0
          %1514 = vmatpush2.msra.mxu0 0.0
          %1515 = vmatprep.subr.mxu0 0.0
          %1516 = vmatpush2.msra.mxu0 0.0
          %1517 = vmatprep.subr.mxu0 0.0
          %1518 = vmatpush2.msra.mxu0 0.0
          %1519 = vmatprep.subr.mxu0 0.0
          %1520 = vmatpush2.msra.mxu0 0.0
          %1521 = vmatprep.subr.mxu0 0.0
          %1522 = vmatpush2.msra.mxu0 0.0
          %1523 = vmatprep.subr.mxu0 0.0
          %1524 = vmatpush2.msra.mxu0 0.0
          %1525 = vmatprep.subr.mxu0 0.0
          %1526 = vmatpush2.msra.mxu0 0.0
          %1527 = vmatprep.subr.mxu0 0.0
          %1528 = vmatpush2.msra.mxu0 0.0
          %1529 = vmatprep.subr.mxu0 0.0
          %1530 = vmatpush2.msra.mxu0 0.0
          %1531 = vmatprep.subr.mxu0 0.0
          %1532 = vmatpush2.msra.mxu0 0.0
          %1533 = vmatprep.subr.mxu0 0.0
          %1534 = vmatpush2.msra.mxu0 0.0
          %1535 = vmatprep.subr.mxu0 0.0
          %1536 = vmatpush2.msra.mxu0 0.0
          %1537 = vmatprep.subr.mxu0 0.0
          %1538 = vmatpush2.msra.mxu0 0.0
          %1539 = vmatprep.mubr.f32.mxu0 0.0
          %1540 = vmatmul.mubr.f32.gmra.mxu0 %v1161
          %v1541 = vpop.f32.mrf.mxu0
          %v1542 = vadd.f32 %v1260, %v1541
          %v1543 = vpop.f32.mrf.mxu0
          %1544 = vdwg.mxu0
          %v1546 = vsel %vm616, %v687, 0
          %v1549 = vsel %vm616, %v1011, 0
          %1551 = vmatprep.subr.mxu0 0.0
          %1552 = vmatpush1.xpose.msra.mxu0 0.0
          %1553 = vmatprep.subr.mxu0 0.0
          %1554 = vmatpush1.xpose.msra.mxu0 0.0
          %1555 = vmatprep.subr.mxu0 0.0
          %1556 = vmatpush1.xpose.msra.mxu0 0.0
          %1557 = vmatprep.subr.mxu0 0.0
          %1558 = vmatpush1.xpose.msra.mxu0 0.0
          %1559 = vmatprep.subr.mxu0 0.0
          %1560 = vmatpush1.xpose.msra.mxu0 0.0
          %1561 = vmatprep.subr.mxu0 0.0
          %1562 = vmatpush1.xpose.msra.mxu0 0.0
          %1563 = vmatprep.subr.mxu0 0.0
          %1564 = vmatpush1.xpose.msra.mxu0 0.0
          %1565 = vmatprep.subr.mxu0 0.0
          %1566 = vmatpush1.xpose.msra.mxu0 0.0
          %1567 = vmatprep.subr.mxu0 0.0
          %1568 = vmatpush1.xpose.msra.mxu0 0.0
          %1569 = vmatprep.subr.mxu0 0.0
          %1570 = vmatpush1.xpose.msra.mxu0 0.0
          %1571 = vmatprep.subr.mxu0 0.0
          %1572 = vmatpush1.xpose.msra.mxu0 0.0
          %1573 = vmatprep.subr.mxu0 0.0
          %1574 = vmatpush1.xpose.msra.mxu0 0.0
          %1575 = vmatprep.subr.mxu0 0.0
          %1576 = vmatpush1.xpose.msra.mxu0 0.0
          %1577 = vmatprep.subr.mxu0 0.0
          %1578 = vmatpush1.xpose.msra.mxu0 0.0
          %1579 = vmatprep.subr.mxu0 0.0
          %1580 = vmatpush1.xpose.msra.mxu0 0.0
          %1581 = vmatprep.subr.mxu0 0.0
          %1582 = vmatpush1.xpose.msra.mxu0 %v1549
          %1583 = vmatprep.subr.mxu0 0.0
          %1584 = vmatpush2.xpose.msra.mxu0 0.0
          %1585 = vmatprep.subr.mxu0 0.0
          %1586 = vmatpush2.xpose.msra.mxu0 0.0
          %1587 = vmatprep.subr.mxu0 0.0
          %1588 = vmatpush2.xpose.msra.mxu0 0.0
          %1589 = vmatprep.subr.mxu0 0.0
          %1590 = vmatpush2.xpose.msra.mxu0 0.0
          %1591 = vmatprep.subr.mxu0 0.0
          %1592 = vmatpush2.xpose.msra.mxu0 0.0
          %1593 = vmatprep.subr.mxu0 0.0
          %1594 = vmatpush2.xpose.msra.mxu0 0.0
          %1595 = vmatprep.subr.mxu0 0.0
          %1596 = vmatpush2.xpose.msra.mxu0 0.0
          %1597 = vmatprep.subr.mxu0 0.0
          %1598 = vmatpush2.xpose.msra.mxu0 0.0
          %1599 = vmatprep.subr.mxu0 0.0
          %1600 = vmatpush2.xpose.msra.mxu0 0.0
          %1601 = vmatprep.subr.mxu0 0.0
          %1602 = vmatpush2.xpose.msra.mxu0 0.0
          %1603 = vmatprep.subr.mxu0 0.0
          %1604 = vmatpush2.xpose.msra.mxu0 0.0
          %1605 = vmatprep.subr.mxu0 0.0
          %1606 = vmatpush2.xpose.msra.mxu0 0.0
          %1607 = vmatprep.subr.mxu0 0.0
          %1608 = vmatpush2.xpose.msra.mxu0 0.0
          %1609 = vmatprep.subr.mxu0 0.0
          %1610 = vmatpush2.xpose.msra.mxu0 0.0
          %1611 = vmatprep.subr.mxu0 0.0
          %1612 = vmatpush2.xpose.msra.mxu0 0.0
          %1613 = vmatprep.subr.mxu0 0.0
          %1614 = vmatpush2.xpose.msra.mxu0 0.0
          %1615 = vmatprep.mubr.f32.mxu0 0.0
          %1616 = vmatmul.mubr.f32.gmra.mxu0 %v1546
          %v1617 = vpop.f32.mrf.mxu0
          %v1618 = vadd.f32 0.0, %v1617
          %v1619 = vpop.f32.mrf.mxu0
          %1620 = vdwg.mxu0
          %v1622 = vsel %vm616, %v760, 0
          %v1625 = vsel %vm616, %v1084, 0
          %1627 = vmatprep.subr.mxu0 0.0
          %1628 = vmatpush1.xpose.msra.mxu0 0.0
          %1629 = vmatprep.subr.mxu0 0.0
          %1630 = vmatpush1.xpose.msra.mxu0 0.0
          %1631 = vmatprep.subr.mxu0 0.0
          %1632 = vmatpush1.xpose.msra.mxu0 0.0
          %1633 = vmatprep.subr.mxu0 0.0
          %1634 = vmatpush1.xpose.msra.mxu0 0.0
          %1635 = vmatprep.subr.mxu0 0.0
          %1636 = vmatpush1.xpose.msra.mxu0 0.0
          %1637 = vmatprep.subr.mxu0 0.0
          %1638 = vmatpush1.xpose.msra.mxu0 0.0
          %1639 = vmatprep.subr.mxu0 0.0
          %1640 = vmatpush1.xpose.msra.mxu0 0.0
          %1641 = vmatprep.subr.mxu0 0.0
          %1642 = vmatpush1.xpose.msra.mxu0 0.0
          %1643 = vmatprep.subr.mxu0 0.0
          %1644 = vmatpush1.xpose.msra.mxu0 0.0
          %1645 = vmatprep.subr.mxu0 0.0
          %1646 = vmatpush1.xpose.msra.mxu0 0.0
          %1647 = vmatprep.subr.mxu0 0.0
          %1648 = vmatpush1.xpose.msra.mxu0 0.0
          %1649 = vmatprep.subr.mxu0 0.0
          %1650 = vmatpush1.xpose.msra.mxu0 0.0
          %1651 = vmatprep.subr.mxu0 0.0
          %1652 = vmatpush1.xpose.msra.mxu0 0.0
          %1653 = vmatprep.subr.mxu0 0.0
          %1654 = vmatpush1.xpose.msra.mxu0 0.0
          %1655 = vmatprep.subr.mxu0 0.0
          %1656 = vmatpush1.xpose.msra.mxu0 0.0
          %1657 = vmatprep.subr.mxu0 0.0
          %1658 = vmatpush1.xpose.msra.mxu0 %v1625
          %1659 = vmatprep.subr.mxu0 0.0
          %1660 = vmatpush2.xpose.msra.mxu0 0.0
          %1661 = vmatprep.subr.mxu0 0.0
          %1662 = vmatpush2.xpose.msra.mxu0 0.0
          %1663 = vmatprep.subr.mxu0 0.0
          %1664 = vmatpush2.xpose.msra.mxu0 0.0
          %1665 = vmatprep.subr.mxu0 0.0
          %1666 = vmatpush2.xpose.msra.mxu0 0.0
          %1667 = vmatprep.subr.mxu0 0.0
          %1668 = vmatpush2.xpose.msra.mxu0 0.0
          %1669 = vmatprep.subr.mxu0 0.0
          %1670 = vmatpush2.xpose.msra.mxu0 0.0
          %1671 = vmatprep.subr.mxu0 0.0
          %1672 = vmatpush2.xpose.msra.mxu0 0.0
          %1673 = vmatprep.subr.mxu0 0.0
          %1674 = vmatpush2.xpose.msra.mxu0 0.0
          %1675 = vmatprep.subr.mxu0 0.0
          %1676 = vmatpush2.xpose.msra.mxu0 0.0
          %1677 = vmatprep.subr.mxu0 0.0
          %1678 = vmatpush2.xpose.msra.mxu0 0.0
          %1679 = vmatprep.subr.mxu0 0.0
          %1680 = vmatpush2.xpose.msra.mxu0 0.0
          %1681 = vmatprep.subr.mxu0 0.0
          %1682 = vmatpush2.xpose.msra.mxu0 0.0
          %1683 = vmatprep.subr.mxu0 0.0
          %1684 = vmatpush2.xpose.msra.mxu0 0.0
          %1685 = vmatprep.subr.mxu0 0.0
          %1686 = vmatpush2.xpose.msra.mxu0 0.0
          %1687 = vmatprep.subr.mxu0 0.0
          %1688 = vmatpush2.xpose.msra.mxu0 0.0
          %1689 = vmatprep.subr.mxu0 0.0
          %1690 = vmatpush2.xpose.msra.mxu0 0.0
          %1691 = vmatprep.mubr.f32.mxu0 0.0
          %1692 = vmatmul.mubr.f32.gmra.mxu0 %v1622
          %v1693 = vpop.f32.mrf.mxu0
          %v1694 = vadd.f32 0.0, %v1693
          %v1695 = vpop.f32.mrf.mxu0
          %1696 = vdwg.mxu0
          %v1698 = vsel %vm616, %v833, 0
          %v1701 = vsel %vm616, %v1157, 0
          %1703 = vmatprep.subr.mxu0 0.0
          %1704 = vmatpush1.xpose.msra.mxu0 0.0
          %1705 = vmatprep.subr.mxu0 0.0
          %1706 = vmatpush1.xpose.msra.mxu0 0.0
          %1707 = vmatprep.subr.mxu0 0.0
          %1708 = vmatpush1.xpose.msra.mxu0 0.0
          %1709 = vmatprep.subr.mxu0 0.0
          %1710 = vmatpush1.xpose.msra.mxu0 0.0
          %1711 = vmatprep.subr.mxu0 0.0
          %1712 = vmatpush1.xpose.msra.mxu0 0.0
          %1713 = vmatprep.subr.mxu0 0.0
          %1714 = vmatpush1.xpose.msra.mxu0 0.0
          %1715 = vmatprep.subr.mxu0 0.0
          %1716 = vmatpush1.xpose.msra.mxu0 0.0
          %1717 = vmatprep.subr.mxu0 0.0
          %1718 = vmatpush1.xpose.msra.mxu0 0.0
          %1719 = vmatprep.subr.mxu0 0.0
          %1720 = vmatpush1.xpose.msra.mxu0 0.0
          %1721 = vmatprep.subr.mxu0 0.0
          %1722 = vmatpush1.xpose.msra.mxu0 0.0
          %1723 = vmatprep.subr.mxu0 0.0
          %1724 = vmatpush1.xpose.msra.mxu0 0.0
          %1725 = vmatprep.subr.mxu0 0.0
          %1726 = vmatpush1.xpose.msra.mxu0 0.0
          %1727 = vmatprep.subr.mxu0 0.0
          %1728 = vmatpush1.xpose.msra.mxu0 0.0
          %1729 = vmatprep.subr.mxu0 0.0
          %1730 = vmatpush1.xpose.msra.mxu0 0.0
          %1731 = vmatprep.subr.mxu0 0.0
          %1732 = vmatpush1.xpose.msra.mxu0 0.0
          %1733 = vmatprep.subr.mxu0 0.0
          %1734 = vmatpush1.xpose.msra.mxu0 %v1701
          %1735 = vmatprep.subr.mxu0 0.0
          %1736 = vmatpush2.xpose.msra.mxu0 0.0
          %1737 = vmatprep.subr.mxu0 0.0
          %1738 = vmatpush2.xpose.msra.mxu0 0.0
          %1739 = vmatprep.subr.mxu0 0.0
          %1740 = vmatpush2.xpose.msra.mxu0 0.0
          %1741 = vmatprep.subr.mxu0 0.0
          %1742 = vmatpush2.xpose.msra.mxu0 0.0
          %1743 = vmatprep.subr.mxu0 0.0
          %1744 = vmatpush2.xpose.msra.mxu0 0.0
          %1745 = vmatprep.subr.mxu0 0.0
          %1746 = vmatpush2.xpose.msra.mxu0 0.0
          %1747 = vmatprep.subr.mxu0 0.0
          %1748 = vmatpush2.xpose.msra.mxu0 0.0
          %1749 = vmatprep.subr.mxu0 0.0
          %1750 = vmatpush2.xpose.msra.mxu0 0.0
          %1751 = vmatprep.subr.mxu0 0.0
          %1752 = vmatpush2.xpose.msra.mxu0 0.0
          %1753 = vmatprep.subr.mxu0 0.0
          %1754 = vmatpush2.xpose.msra.mxu0 0.0
          %1755 = vmatprep.subr.mxu0 0.0
          %1756 = vmatpush2.xpose.msra.mxu0 0.0
          %1757 = vmatprep.subr.mxu0 0.0
          %1758 = vmatpush2.xpose.msra.mxu0 0.0
          %1759 = vmatprep.subr.mxu0 0.0
          %1760 = vmatpush2.xpose.msra.mxu0 0.0
          %1761 = vmatprep.subr.mxu0 0.0
          %1762 = vmatpush2.xpose.msra.mxu0 0.0
          %1763 = vmatprep.subr.mxu0 0.0
          %1764 = vmatpush2.xpose.msra.mxu0 0.0
          %1765 = vmatprep.subr.mxu0 0.0
          %1766 = vmatpush2.xpose.msra.mxu0 0.0
          %1767 = vmatprep.mubr.f32.mxu0 0.0
          %1768 = vmatmul.mubr.f32.gmra.mxu0 %v1698
          %v1769 = vpop.f32.mrf.mxu0
          %v1770 = vadd.f32 0.0, %v1769
          %v1771 = vpop.f32.mrf.mxu0
          %1772 = vdwg.mxu0
          %v1774 = vsel %vm616, %v906, 0
          %v1777 = vsel %vm616, %v1230, 0
          %1779 = vmatprep.subr.mxu0 0.0
          %1780 = vmatpush1.xpose.msra.mxu0 0.0
          %1781 = vmatprep.subr.mxu0 0.0
          %1782 = vmatpush1.xpose.msra.mxu0 0.0
          %1783 = vmatprep.subr.mxu0 0.0
          %1784 = vmatpush1.xpose.msra.mxu0 0.0
          %1785 = vmatprep.subr.mxu0 0.0
          %1786 = vmatpush1.xpose.msra.mxu0 0.0
          %1787 = vmatprep.subr.mxu0 0.0
          %1788 = vmatpush1.xpose.msra.mxu0 0.0
          %1789 = vmatprep.subr.mxu0 0.0
          %1790 = vmatpush1.xpose.msra.mxu0 0.0
          %1791 = vmatprep.subr.mxu0 0.0
          %1792 = vmatpush1.xpose.msra.mxu0 0.0
          %1793 = vmatprep.subr.mxu0 0.0
          %1794 = vmatpush1.xpose.msra.mxu0 0.0
          %1795 = vmatprep.subr.mxu0 0.0
          %1796 = vmatpush1.xpose.msra.mxu0 0.0
          %1797 = vmatprep.subr.mxu0 0.0
          %1798 = vmatpush1.xpose.msra.mxu0 0.0
          %1799 = vmatprep.subr.mxu0 0.0
          %1800 = vmatpush1.xpose.msra.mxu0 0.0
          %1801 = vmatprep.subr.mxu0 0.0
          %1802 = vmatpush1.xpose.msra.mxu0 0.0
          %1803 = vmatprep.subr.mxu0 0.0
          %1804 = vmatpush1.xpose.msra.mxu0 0.0
          %1805 = vmatprep.subr.mxu0 0.0
          %1806 = vmatpush1.xpose.msra.mxu0 0.0
          %1807 = vmatprep.subr.mxu0 0.0
          %1808 = vmatpush1.xpose.msra.mxu0 0.0
          %1809 = vmatprep.subr.mxu0 0.0
          %1810 = vmatpush1.xpose.msra.mxu0 %v1777
          %1811 = vmatprep.subr.mxu0 0.0
          %1812 = vmatpush2.xpose.msra.mxu0 0.0
          %1813 = vmatprep.subr.mxu0 0.0
          %1814 = vmatpush2.xpose.msra.mxu0 0.0
          %1815 = vmatprep.subr.mxu0 0.0
          %1816 = vmatpush2.xpose.msra.mxu0 0.0
          %1817 = vmatprep.subr.mxu0 0.0
          %1818 = vmatpush2.xpose.msra.mxu0 0.0
          %1819 = vmatprep.subr.mxu0 0.0
          %1820 = vmatpush2.xpose.msra.mxu0 0.0
          %1821 = vmatprep.subr.mxu0 0.0
          %1822 = vmatpush2.xpose.msra.mxu0 0.0
          %1823 = vmatprep.subr.mxu0 0.0
          %1824 = vmatpush2.xpose.msra.mxu0 0.0
          %1825 = vmatprep.subr.mxu0 0.0
          %1826 = vmatpush2.xpose.msra.mxu0 0.0
          %1827 = vmatprep.subr.mxu0 0.0
          %1828 = vmatpush2.xpose.msra.mxu0 0.0
          %1829 = vmatprep.subr.mxu0 0.0
          %1830 = vmatpush2.xpose.msra.mxu0 0.0
          %1831 = vmatprep.subr.mxu0 0.0
          %1832 = vmatpush2.xpose.msra.mxu0 0.0
          %1833 = vmatprep.subr.mxu0 0.0
          %1834 = vmatpush2.xpose.msra.mxu0 0.0
          %1835 = vmatprep.subr.mxu0 0.0
          %1836 = vmatpush2.xpose.msra.mxu0 0.0
          %1837 = vmatprep.subr.mxu0 0.0
          %1838 = vmatpush2.xpose.msra.mxu0 0.0
          %1839 = vmatprep.subr.mxu0 0.0
          %1840 = vmatpush2.xpose.msra.mxu0 0.0
          %1841 = vmatprep.subr.mxu0 0.0
          %1842 = vmatpush2.xpose.msra.mxu0 0.0
          %1843 = vmatprep.mubr.f32.mxu0 0.0
          %1844 = vmatmul.mubr.f32.gmra.mxu0 %v1774
          %v1845 = vpop.f32.mrf.mxu0
          %v1846 = vadd.f32 0.0, %v1845
          %v1847 = vpop.f32.mrf.mxu0
          %1848 = vdwg.mxu0
          %s1849 = smul.u32 %s32, 8
          %v1850 = vlaneseq
          %v1851 = vshrl.u32 %v1850, 7
          %v1852 = vstv %s1849
          %v1853 = vadd.s32 %v1852, %v1851
          %s1854 = smul.u32 %s33, 8
          %v1855 = vlaneseq
          %v1856 = vand.u32 %v1855, 127
          %v1857 = vstv %s1854
          %v1858 = vadd.s32 %v1857, %v1856
          %vm1859 = vcmp.ge.s32.totalorder %v1853, %v1858
          %v1860 = vsel %vm1859, 1, 0
          %v1861 = vcvt.s32.f32 %v1860
          %v1862 = vmul.f32 %v1618, 0.35355338
          %v1863 = vmul.f32 %v1694, 0.35355338
          %v1864 = vmul.f32 %v1770, 0.35355338
          %v1865 = vmul.f32 %v1846, 0.35355338
          %v1866 = vmul.f32 %v1862, %v1861
          %v1867 = vmul.f32 %v1863, %v1861
          %v1868 = vmul.f32 %v1864, %v1861
          %v1869 = vmul.f32 %v1865, %v1861
          %v1870 = vld [vmem:[#allocation2] sm:$0xff]
          %v1871 = vld [vmem:[#allocation2 + $0x8] sm:$0xff]
          %v1872 = vld [vmem:[#allocation2 + $0x10] sm:$0xff]
          %v1873 = vld [vmem:[#allocation2 + $0x18] sm:$0xff]
          %v1875 = vsel %vm616, %v1866, 0
          %1877 = vmatprep.subr.mxu0 0.0
          %1878 = vmatpush1.msra.mxu0 0.0
          %1879 = vmatprep.subr.mxu0 0.0
          %1880 = vmatpush1.msra.mxu0 0.0
          %1881 = vmatprep.subr.mxu0 0.0
          %1882 = vmatpush1.msra.mxu0 0.0
          %1883 = vmatprep.subr.mxu0 0.0
          %1884 = vmatpush1.msra.mxu0 0.0
          %1885 = vmatprep.subr.mxu0 0.0
          %1886 = vmatpush1.msra.mxu0 0.0
          %1887 = vmatprep.subr.mxu0 0.0
          %1888 = vmatpush1.msra.mxu0 0.0
          %1889 = vmatprep.subr.mxu0 0.0
          %1890 = vmatpush1.msra.mxu0 0.0
          %1891 = vmatprep.subr.mxu0 0.0
          %1892 = vmatpush1.msra.mxu0 0.0
          %1893 = vmatprep.subr.mxu0 0.0
          %1894 = vmatpush1.msra.mxu0 0.0
          %1895 = vmatprep.subr.mxu0 0.0
          %1896 = vmatpush1.msra.mxu0 0.0
          %1897 = vmatprep.subr.mxu0 0.0
          %1898 = vmatpush1.msra.mxu0 0.0
          %1899 = vmatprep.subr.mxu0 0.0
          %1900 = vmatpush1.msra.mxu0 0.0
          %1901 = vmatprep.subr.mxu0 0.0
          %1902 = vmatpush1.msra.mxu0 0.0
          %1903 = vmatprep.subr.mxu0 0.0
          %1904 = vmatpush1.msra.mxu0 0.0
          %1905 = vmatprep.subr.mxu0 0.0
          %1906 = vmatpush1.msra.mxu0 0.0
          %1907 = vmatprep.subr.mxu0 0.0
          %1908 = vmatpush1.msra.mxu0 %v1332
          %1909 = vmatprep.subr.mxu0 0.0
          %1910 = vmatpush2.msra.mxu0 0.0
          %1911 = vmatprep.subr.mxu0 0.0
          %1912 = vmatpush2.msra.mxu0 0.0
          %1913 = vmatprep.subr.mxu0 0.0
          %1914 = vmatpush2.msra.mxu0 0.0
          %1915 = vmatprep.subr.mxu0 0.0
          %1916 = vmatpush2.msra.mxu0 0.0
          %1917 = vmatprep.subr.mxu0 0.0
          %1918 = vmatpush2.msra.mxu0 0.0
          %1919 = vmatprep.subr.mxu0 0.0
          %1920 = vmatpush2.msra.mxu0 0.0
          %1921 = vmatprep.subr.mxu0 0.0
          %1922 = vmatpush2.msra.mxu0 0.0
          %1923 = vmatprep.subr.mxu0 0.0
          %1924 = vmatpush2.msra.mxu0 0.0
          %1925 = vmatprep.subr.mxu0 0.0
          %1926 = vmatpush2.msra.mxu0 0.0
          %1927 = vmatprep.subr.mxu0 0.0
          %1928 = vmatpush2.msra.mxu0 0.0
          %1929 = vmatprep.subr.mxu0 0.0
          %1930 = vmatpush2.msra.mxu0 0.0
          %1931 = vmatprep.subr.mxu0 0.0
          %1932 = vmatpush2.msra.mxu0 0.0
          %1933 = vmatprep.subr.mxu0 0.0
          %1934 = vmatpush2.msra.mxu0 0.0
          %1935 = vmatprep.subr.mxu0 0.0
          %1936 = vmatpush2.msra.mxu0 0.0
          %1937 = vmatprep.subr.mxu0 0.0
          %1938 = vmatpush2.msra.mxu0 0.0
          %1939 = vmatprep.subr.mxu0 0.0
          %1940 = vmatpush2.msra.mxu0 0.0
          %1941 = vmatprep.mubr.f32.mxu0 0.0
          %1942 = vmatmul.mubr.f32.gmra.mxu0 %v1875
          %v1943 = vpop.f32.mrf.mxu0
          %v1944 = vadd.f32 0.0, %v1943
          %v1945 = vpop.f32.mrf.mxu0
          %1946 = vdwg.mxu0
          %v1948 = vsel %vm616, %v1867, 0
          %1950 = vmatprep.subr.mxu0 0.0
          %1951 = vmatpush1.msra.mxu0 0.0
          %1952 = vmatprep.subr.mxu0 0.0
          %1953 = vmatpush1.msra.mxu0 0.0
          %1954 = vmatprep.subr.mxu0 0.0
          %1955 = vmatpush1.msra.mxu0 0.0
          %1956 = vmatprep.subr.mxu0 0.0
          %1957 = vmatpush1.msra.mxu0 0.0
          %1958 = vmatprep.subr.mxu0 0.0
          %1959 = vmatpush1.msra.mxu0 0.0
          %1960 = vmatprep.subr.mxu0 0.0
          %1961 = vmatpush1.msra.mxu0 0.0
          %1962 = vmatprep.subr.mxu0 0.0
          %1963 = vmatpush1.msra.mxu0 0.0
          %1964 = vmatprep.subr.mxu0 0.0
          %1965 = vmatpush1.msra.mxu0 0.0
          %1966 = vmatprep.subr.mxu0 0.0
          %1967 = vmatpush1.msra.mxu0 0.0
          %1968 = vmatprep.subr.mxu0 0.0
          %1969 = vmatpush1.msra.mxu0 0.0
          %1970 = vmatprep.subr.mxu0 0.0
          %1971 = vmatpush1.msra.mxu0 0.0
          %1972 = vmatprep.subr.mxu0 0.0
          %1973 = vmatpush1.msra.mxu0 0.0
          %1974 = vmatprep.subr.mxu0 0.0
          %1975 = vmatpush1.msra.mxu0 0.0
          %1976 = vmatprep.subr.mxu0 0.0
          %1977 = vmatpush1.msra.mxu0 0.0
          %1978 = vmatprep.subr.mxu0 0.0
          %1979 = vmatpush1.msra.mxu0 0.0
          %1980 = vmatprep.subr.mxu0 0.0
          %1981 = vmatpush1.msra.mxu0 %v1402
          %1982 = vmatprep.subr.mxu0 0.0
          %1983 = vmatpush2.msra.mxu0 0.0
          %1984 = vmatprep.subr.mxu0 0.0
          %1985 = vmatpush2.msra.mxu0 0.0
          %1986 = vmatprep.subr.mxu0 0.0
          %1987 = vmatpush2.msra.mxu0 0.0
          %1988 = vmatprep.subr.mxu0 0.0
          %1989 = vmatpush2.msra.mxu0 0.0
          %1990 = vmatprep.subr.mxu0 0.0
          %1991 = vmatpush2.msra.mxu0 0.0
          %1992 = vmatprep.subr.mxu0 0.0
          %1993 = vmatpush2.msra.mxu0 0.0
          %1994 = vmatprep.subr.mxu0 0.0
          %1995 = vmatpush2.msra.mxu0 0.0
          %1996 = vmatprep.subr.mxu0 0.0
          %1997 = vmatpush2.msra.mxu0 0.0
          %1998 = vmatprep.subr.mxu0 0.0
          %1999 = vmatpush2.msra.mxu0 0.0
          %2000 = vmatprep.subr.mxu0 0.0
          %2001 = vmatpush2.msra.mxu0 0.0
          %2002 = vmatprep.subr.mxu0 0.0
          %2003 = vmatpush2.msra.mxu0 0.0
          %2004 = vmatprep.subr.mxu0 0.0
          %2005 = vmatpush2.msra.mxu0 0.0
          %2006 = vmatprep.subr.mxu0 0.0
          %2007 = vmatpush2.msra.mxu0 0.0
          %2008 = vmatprep.subr.mxu0 0.0
          %2009 = vmatpush2.msra.mxu0 0.0
          %2010 = vmatprep.subr.mxu0 0.0
          %2011 = vmatpush2.msra.mxu0 0.0
          %2012 = vmatprep.subr.mxu0 0.0
          %2013 = vmatpush2.msra.mxu0 0.0
          %2014 = vmatprep.mubr.f32.mxu0 0.0
          %2015 = vmatmul.mubr.f32.gmra.mxu0 %v1948
          %v2016 = vpop.f32.mrf.mxu0
          %v2017 = vadd.f32 0.0, %v2016
          %v2018 = vpop.f32.mrf.mxu0
          %2019 = vdwg.mxu0
          %v2021 = vsel %vm616, %v1868, 0
          %2023 = vmatprep.subr.mxu0 0.0
          %2024 = vmatpush1.msra.mxu0 0.0
          %2025 = vmatprep.subr.mxu0 0.0
          %2026 = vmatpush1.msra.mxu0 0.0
          %2027 = vmatprep.subr.mxu0 0.0
          %2028 = vmatpush1.msra.mxu0 0.0
          %2029 = vmatprep.subr.mxu0 0.0
          %2030 = vmatpush1.msra.mxu0 0.0
          %2031 = vmatprep.subr.mxu0 0.0
          %2032 = vmatpush1.msra.mxu0 0.0
          %2033 = vmatprep.subr.mxu0 0.0
          %2034 = vmatpush1.msra.mxu0 0.0
          %2035 = vmatprep.subr.mxu0 0.0
          %2036 = vmatpush1.msra.mxu0 0.0
          %2037 = vmatprep.subr.mxu0 0.0
          %2038 = vmatpush1.msra.mxu0 0.0
          %2039 = vmatprep.subr.mxu0 0.0
          %2040 = vmatpush1.msra.mxu0 0.0
          %2041 = vmatprep.subr.mxu0 0.0
          %2042 = vmatpush1.msra.mxu0 0.0
          %2043 = vmatprep.subr.mxu0 0.0
          %2044 = vmatpush1.msra.mxu0 0.0
          %2045 = vmatprep.subr.mxu0 0.0
          %2046 = vmatpush1.msra.mxu0 0.0
          %2047 = vmatprep.subr.mxu0 0.0
          %2048 = vmatpush1.msra.mxu0 0.0
          %2049 = vmatprep.subr.mxu0 0.0
          %2050 = vmatpush1.msra.mxu0 0.0
          %2051 = vmatprep.subr.mxu0 0.0
          %2052 = vmatpush1.msra.mxu0 0.0
          %2053 = vmatprep.subr.mxu0 0.0
          %2054 = vmatpush1.msra.mxu0 %v1472
          %2055 = vmatprep.subr.mxu0 0.0
          %2056 = vmatpush2.msra.mxu0 0.0
          %2057 = vmatprep.subr.mxu0 0.0
          %2058 = vmatpush2.msra.mxu0 0.0
          %2059 = vmatprep.subr.mxu0 0.0
          %2060 = vmatpush2.msra.mxu0 0.0
          %2061 = vmatprep.subr.mxu0 0.0
          %2062 = vmatpush2.msra.mxu0 0.0
          %2063 = vmatprep.subr.mxu0 0.0
          %2064 = vmatpush2.msra.mxu0 0.0
          %2065 = vmatprep.subr.mxu0 0.0
          %2066 = vmatpush2.msra.mxu0 0.0
          %2067 = vmatprep.subr.mxu0 0.0
          %2068 = vmatpush2.msra.mxu0 0.0
          %2069 = vmatprep.subr.mxu0 0.0
          %2070 = vmatpush2.msra.mxu0 0.0
          %2071 = vmatprep.subr.mxu0 0.0
          %2072 = vmatpush2.msra.mxu0 0.0
          %2073 = vmatprep.subr.mxu0 0.0
          %2074 = vmatpush2.msra.mxu0 0.0
          %2075 = vmatprep.subr.mxu0 0.0
          %2076 = vmatpush2.msra.mxu0 0.0
          %2077 = vmatprep.subr.mxu0 0.0
          %2078 = vmatpush2.msra.mxu0 0.0
          %2079 = vmatprep.subr.mxu0 0.0
          %2080 = vmatpush2.msra.mxu0 0.0
          %2081 = vmatprep.subr.mxu0 0.0
          %2082 = vmatpush2.msra.mxu0 0.0
          %2083 = vmatprep.subr.mxu0 0.0
          %2084 = vmatpush2.msra.mxu0 0.0
          %2085 = vmatprep.subr.mxu0 0.0
          %2086 = vmatpush2.msra.mxu0 0.0
          %2087 = vmatprep.mubr.f32.mxu0 0.0
          %2088 = vmatmul.mubr.f32.gmra.mxu0 %v2021
          %v2089 = vpop.f32.mrf.mxu0
          %v2090 = vadd.f32 0.0, %v2089
          %v2091 = vpop.f32.mrf.mxu0
          %2092 = vdwg.mxu0
          %v2094 = vsel %vm616, %v1869, 0
          %2096 = vmatprep.subr.mxu0 0.0
          %2097 = vmatpush1.msra.mxu0 0.0
          %2098 = vmatprep.subr.mxu0 0.0
          %2099 = vmatpush1.msra.mxu0 0.0
          %2100 = vmatprep.subr.mxu0 0.0
          %2101 = vmatpush1.msra.mxu0 0.0
          %2102 = vmatprep.subr.mxu0 0.0
          %2103 = vmatpush1.msra.mxu0 0.0
          %2104 = vmatprep.subr.mxu0 0.0
          %2105 = vmatpush1.msra.mxu0 0.0
          %2106 = vmatprep.subr.mxu0 0.0
          %2107 = vmatpush1.msra.mxu0 0.0
          %2108 = vmatprep.subr.mxu0 0.0
          %2109 = vmatpush1.msra.mxu0 0.0
          %2110 = vmatprep.subr.mxu0 0.0
          %2111 = vmatpush1.msra.mxu0 0.0
          %2112 = vmatprep.subr.mxu0 0.0
          %2113 = vmatpush1.msra.mxu0 0.0
          %2114 = vmatprep.subr.mxu0 0.0
          %2115 = vmatpush1.msra.mxu0 0.0
          %2116 = vmatprep.subr.mxu0 0.0
          %2117 = vmatpush1.msra.mxu0 0.0
          %2118 = vmatprep.subr.mxu0 0.0
          %2119 = vmatpush1.msra.mxu0 0.0
          %2120 = vmatprep.subr.mxu0 0.0
          %2121 = vmatpush1.msra.mxu0 0.0
          %2122 = vmatprep.subr.mxu0 0.0
          %2123 = vmatpush1.msra.mxu0 0.0
          %2124 = vmatprep.subr.mxu0 0.0
          %2125 = vmatpush1.msra.mxu0 0.0
          %2126 = vmatprep.subr.mxu0 0.0
          %2127 = vmatpush1.msra.mxu0 %v1542
          %2128 = vmatprep.subr.mxu0 0.0
          %2129 = vmatpush2.msra.mxu0 0.0
          %2130 = vmatprep.subr.mxu0 0.0
          %2131 = vmatpush2.msra.mxu0 0.0
          %2132 = vmatprep.subr.mxu0 0.0
          %2133 = vmatpush2.msra.mxu0 0.0
          %2134 = vmatprep.subr.mxu0 0.0
          %2135 = vmatpush2.msra.mxu0 0.0
          %2136 = vmatprep.subr.mxu0 0.0
          %2137 = vmatpush2.msra.mxu0 0.0
          %2138 = vmatprep.subr.mxu0 0.0
          %2139 = vmatpush2.msra.mxu0 0.0
          %2140 = vmatprep.subr.mxu0 0.0
          %2141 = vmatpush2.msra.mxu0 0.0
          %2142 = vmatprep.subr.mxu0 0.0
          %2143 = vmatpush2.msra.mxu0 0.0
          %2144 = vmatprep.subr.mxu0 0.0
          %2145 = vmatpush2.msra.mxu0 0.0
          %2146 = vmatprep.subr.mxu0 0.0
          %2147 = vmatpush2.msra.mxu0 0.0
          %2148 = vmatprep.subr.mxu0 0.0
          %2149 = vmatpush2.msra.mxu0 0.0
          %2150 = vmatprep.subr.mxu0 0.0
          %2151 = vmatpush2.msra.mxu0 0.0
          %2152 = vmatprep.subr.mxu0 0.0
          %2153 = vmatpush2.msra.mxu0 0.0
          %2154 = vmatprep.subr.mxu0 0.0
          %2155 = vmatpush2.msra.mxu0 0.0
          %2156 = vmatprep.subr.mxu0 0.0
          %2157 = vmatpush2.msra.mxu0 0.0
          %2158 = vmatprep.subr.mxu0 0.0
          %2159 = vmatpush2.msra.mxu0 0.0
          %2160 = vmatprep.mubr.f32.mxu0 0.0
          %2161 = vmatmul.mubr.f32.gmra.mxu0 %v2094
          %v2162 = vpop.f32.mrf.mxu0
          %v2163 = vadd.f32 0.0, %v2162
          %v2164 = vpop.f32.mrf.mxu0
          %2165 = vdwg.mxu0
          %v2166 = vadd.f32 %v1870, %v1944
          %v2167 = vadd.f32 %v1871, %v2017
          %v2168 = vadd.f32 %v1872, %v2090
          %v2169 = vadd.f32 %v1873, %v2163
          %2170 = vst.msk [vmem:[#allocation2] sm:$0xff] %vm616, %v2166
          %2171 = vst.msk [vmem:[#allocation2 + $0x8] sm:$0xff] %vm616, %v2167
          %2172 = vst.msk [vmem:[#allocation2 + $0x10] sm:$0xff] %vm616, %v2168
          %2173 = vst.msk [vmem:[#allocation2 + $0x18] sm:$0xff] %vm616, %v2169
        $region152: #{tpu_custom_call.1} parent=135 // pred_fallthru
          _
        %p2174 = scmp.eq.s32.totalorder %s33, 1
        // Predicated region
        $region153: #{tpu_custom_call.1} parent=135 // pred_check
          %p2175 = pneg %p2174
        $region154: #{tpu_custom_call.1} parent=135 // pred_check_branch
          %2177 = sbr.rel (%p2175) target = $region156
        $region155: #{tpu_custom_call.1} parent=135 // pred_region
          %v2178 = vld [vmem:[#allocation2] sm:$0xff]
          %v2179 = vld [vmem:[#allocation2 + $0x8] sm:$0xff]
          %v2180 = vld [vmem:[#allocation2 + $0x10] sm:$0xff]
          %v2181 = vld [vmem:[#allocation2 + $0x18] sm:$0xff]
          %vm2182 = vcmask 64512
          %v2183 = vsel %vm2182, %v2178, 0.0
          %2184 = vadd.xlane.f32.xlu0 %v2183
          %v2185 = vpop.xlane.xlu0 %2184
          %v2186 = vsel %vm2182, %v2179, 0.0
          %2187 = vadd.xlane.f32.xlu0 %v2186
          %v2188 = vpop.xlane.xlu0 %2187
          %v2189 = vsel %vm2182, %v2180, 0.0
          %2190 = vadd.xlane.f32.xlu0 %v2189
          %v2191 = vpop.xlane.xlu0 %2190
          %v2192 = vsel %vm2182, %v2181, 0.0
          %2193 = vadd.xlane.f32.xlu0 %v2192
          %v2194 = vpop.xlane.xlu0 %2193
          %v2195 = vadd.f32 %v2185, %v2188
          %v2196 = vadd.f32 %v2195, %v2191
          %v2197 = vadd.f32 %v2196, %v2194
          %v2198 = vmul.f32 %v2197, 0.03125
          %v2199 = vsub.f32 %v2178, %v2198
          %v2200 = vsub.f32 %v2179, %v2198
          %v2201 = vsub.f32 %v2180, %v2198
          %v2202 = vsub.f32 %v2181, %v2198
          %v2203 = vmul.f32 %v2199, %v2199
          %v2204 = vmul.f32 %v2200, %v2200
          %v2205 = vmul.f32 %v2201, %v2201
          %v2206 = vmul.f32 %v2202, %v2202
          %v2207 = vsel %vm2182, %v2203, 0.0
          %2208 = vadd.xlane.f32.xlu0 %v2207
          %v2209 = vpop.xlane.xlu0 %2208
          %v2210 = vsel %vm2182, %v2204, 0.0
          %2211 = vadd.xlane.f32.xlu0 %v2210
          %v2212 = vpop.xlane.xlu0 %2211
          %v2213 = vsel %vm2182, %v2205, 0.0
          %2214 = vadd.xlane.f32.xlu0 %v2213
          %v2215 = vpop.xlane.xlu0 %2214
          %v2216 = vsel %vm2182, %v2206, 0.0
          %2217 = vadd.xlane.f32.xlu0 %v2216
          %v2218 = vpop.xlane.xlu0 %2217
          %v2219 = vadd.f32 %v2209, %v2212
          %v2220 = vadd.f32 %v2219, %v2215
          %v2221 = vadd.f32 %v2220, %v2218
          %v2222 = vmul.f32 %v2221, 0.03125
          %v2223 = vadd.f32 %v2222, 1e-05
          %v2224 = vrsqrt.pop %v2223
          %v2225 = vmul.f32 %v2199, %v2224
          %v2226 = vmul.f32 %v2200, %v2224
          %v2227 = vmul.f32 %v2201, %v2224
          %v2228 = vmul.f32 %v2202, %v2224
          %v2229 = vld [vmem:[%s8] sm:$0x1]
          %v2230 = vld [vmem:[%s8 + $0x1] sm:$0x1]
          %v2231 = vld [vmem:[%s8 + $0x2] sm:$0x1]
          %v2232 = vld [vmem:[%s8 + $0x3] sm:$0x1]
          %v2237 = vlaneseq
          %v2238 = vshrl.u32 %v2237, 7
          %v2239 = vsub.s32 0, %v2238
          %v2240 = vrot.slane %v2229, %v2239
          %v2241 = vlaneseq
          %v2242 = vshrl.u32 %v2241, 7
          %v2243 = vsub.s32 0, %v2242
          %v2244 = vrot.slane %v2230, %v2243
          %v2245 = vlaneseq
          %v2246 = vshrl.u32 %v2245, 7
          %v2247 = vsub.s32 0, %v2246
          %v2248 = vrot.slane %v2231, %v2247
          %v2249 = vlaneseq
          %v2250 = vshrl.u32 %v2249, 7
          %v2251 = vsub.s32 0, %v2250
          %v2252 = vrot.slane %v2232, %v2251
          %v2257 = vmul.f32 %v2225, %v2240
          %v2258 = vmul.f32 %v2226, %v2244
          %v2259 = vmul.f32 %v2227, %v2248
          %v2260 = vmul.f32 %v2228, %v2252
          %v2261 = vld [vmem:[%s9] sm:$0x1]
          %v2262 = vld [vmem:[%s9 + $0x1] sm:$0x1]
          %v2263 = vld [vmem:[%s9 + $0x2] sm:$0x1]
          %v2264 = vld [vmem:[%s9 + $0x3] sm:$0x1]
          %v2269 = vlaneseq
          %v2270 = vshrl.u32 %v2269, 7
          %v2271 = vsub.s32 0, %v2270
          %v2272 = vrot.slane %v2261, %v2271
          %v2273 = vlaneseq
          %v2274 = vshrl.u32 %v2273, 7
          %v2275 = vsub.s32 0, %v2274
          %v2276 = vrot.slane %v2262, %v2275
          %v2277 = vlaneseq
          %v2278 = vshrl.u32 %v2277, 7
          %v2279 = vsub.s32 0, %v2278
          %v2280 = vrot.slane %v2263, %v2279
          %v2281 = vlaneseq
          %v2282 = vshrl.u32 %v2281, 7
          %v2283 = vsub.s32 0, %v2282
          %v2284 = vrot.slane %v2264, %v2283
          %v2289 = vadd.f32 %v2257, %v2272
          %v2290 = vadd.f32 %v2258, %v2276
          %v2291 = vadd.f32 %v2259, %v2280
          %v2292 = vadd.f32 %v2260, %v2284
          %v2293 = vmul.f32 %v2289, 0.5
          %v2294 = vmul.f32 %v2290, 0.5
          %v2295 = vmul.f32 %v2291, 0.5
          %v2296 = vmul.f32 %v2292, 0.5
          %v2297 = vmul.f32 %v2289, 0.70710677
          %v2298 = vmul.f32 %v2290, 0.70710677
          %v2299 = vmul.f32 %v2291, 0.70710677
          %v2300 = vmul.f32 %v2292, 0.70710677
          %v2301 = verf.f32.pop %v2297
          %v2302 = verf.f32.pop %v2298
          %v2303 = verf.f32.pop %v2299
          %v2304 = verf.f32.pop %v2300
          %v2305 = vadd.f32 %v2301, 1.0
          %v2306 = vadd.f32 %v2302, 1.0
          %v2307 = vadd.f32 %v2303, 1.0
          %v2308 = vadd.f32 %v2304, 1.0
          %v2309 = vmul.f32 %v2293, %v2305
          %v2310 = vmul.f32 %v2294, %v2306
          %v2311 = vmul.f32 %v2295, %v2307
          %v2312 = vmul.f32 %v2296, %v2308
          %v2313 = vld [vmem:[%s10] sm:$0xff]
          %v2314 = vld [vmem:[%s10 + $0x8] sm:$0xff]
          %v2315 = vld [vmem:[%s10 + $0x10] sm:$0xff]
          %v2316 = vld [vmem:[%s10 + $0x18] sm:$0xff]
          %v2318 = vsel %vm2182, %v2310, 0
          %2320 = vmatprep.subr.mxu0 0.0
          %2321 = vmatpush1.msra.mxu0 0.0
          %2322 = vmatprep.subr.mxu0 0.0
          %2323 = vmatpush1.msra.mxu0 0.0
          %2324 = vmatprep.subr.mxu0 0.0
          %2325 = vmatpush1.msra.mxu0 0.0
          %2326 = vmatprep.subr.mxu0 0.0
          %2327 = vmatpush1.msra.mxu0 0.0
          %2328 = vmatprep.subr.mxu0 0.0
          %2329 = vmatpush1.msra.mxu0 0.0
          %2330 = vmatprep.subr.mxu0 0.0
          %2331 = vmatpush1.msra.mxu0 0.0
          %2332 = vmatprep.subr.mxu0 0.0
          %2333 = vmatpush1.msra.mxu0 0.0
          %2334 = vmatprep.subr.mxu0 0.0
          %2335 = vmatpush1.msra.mxu0 0.0
          %2336 = vmatprep.subr.mxu0 0.0
          %2337 = vmatpush1.msra.mxu0 0.0
          %2338 = vmatprep.subr.mxu0 0.0
          %2339 = vmatpush1.msra.mxu0 0.0
          %2340 = vmatprep.subr.mxu0 0.0
          %2341 = vmatpush1.msra.mxu0 0.0
          %2342 = vmatprep.subr.mxu0 0.0
          %2343 = vmatpush1.msra.mxu0 0.0
          %2344 = vmatprep.subr.mxu0 0.0
          %2345 = vmatpush1.msra.mxu0 0.0
          %2346 = vmatprep.subr.mxu0 0.0
          %2347 = vmatpush1.msra.mxu0 0.0
          %2348 = vmatprep.subr.mxu0 0.0
          %2349 = vmatpush1.msra.mxu0 0.0
          %2350 = vmatprep.subr.mxu0 0.0
          %2351 = vmatpush1.msra.mxu0 %v2314
          %2352 = vmatprep.subr.mxu0 0.0
          %2353 = vmatpush2.msra.mxu0 0.0
          %2354 = vmatprep.subr.mxu0 0.0
          %2355 = vmatpush2.msra.mxu0 0.0
          %2356 = vmatprep.subr.mxu0 0.0
          %2357 = vmatpush2.msra.mxu0 0.0
          %2358 = vmatprep.subr.mxu0 0.0
          %2359 = vmatpush2.msra.mxu0 0.0
          %2360 = vmatprep.subr.mxu0 0.0
          %2361 = vmatpush2.msra.mxu0 0.0
          %2362 = vmatprep.subr.mxu0 0.0
          %2363 = vmatpush2.msra.mxu0 0.0
          %2364 = vmatprep.subr.mxu0 0.0
          %2365 = vmatpush2.msra.mxu0 0.0
          %2366 = vmatprep.subr.mxu0 0.0
          %2367 = vmatpush2.msra.mxu0 0.0
          %2368 = vmatprep.subr.mxu0 0.0
          %2369 = vmatpush2.msra.mxu0 0.0
          %2370 = vmatprep.subr.mxu0 0.0
          %2371 = vmatpush2.msra.mxu0 0.0
          %2372 = vmatprep.subr.mxu0 0.0
          %2373 = vmatpush2.msra.mxu0 0.0
          %2374 = vmatprep.subr.mxu0 0.0
          %2375 = vmatpush2.msra.mxu0 0.0
          %2376 = vmatprep.subr.mxu0 0.0
          %2377 = vmatpush2.msra.mxu0 0.0
          %2378 = vmatprep.subr.mxu0 0.0
          %2379 = vmatpush2.msra.mxu0 0.0
          %2380 = vmatprep.subr.mxu0 0.0
          %2381 = vmatpush2.msra.mxu0 0.0
          %2382 = vmatprep.subr.mxu0 0.0
          %2383 = vmatpush2.msra.mxu0 0.0
          %2384 = vmatprep.mubr.f32.mxu0 0.0
          %2385 = vmatmul.mubr.f32.gmra.mxu0 %v2318
          %v2386 = vpop.f32.mrf.mxu0
          %v2387 = vadd.f32 0.0, %v2386
          %v2388 = vpop.f32.mrf.mxu0
          %2389 = vdwg.mxu0
          %v2391 = vsel %vm2182, %v2309, 0
          %2393 = vmatprep.subr.mxu0 0.0
          %2394 = vmatpush1.msra.mxu0 0.0
          %2395 = vmatprep.subr.mxu0 0.0
          %2396 = vmatpush1.msra.mxu0 0.0
          %2397 = vmatprep.subr.mxu0 0.0
          %2398 = vmatpush1.msra.mxu0 0.0
          %2399 = vmatprep.subr.mxu0 0.0
          %2400 = vmatpush1.msra.mxu0 0.0
          %2401 = vmatprep.subr.mxu0 0.0
          %2402 = vmatpush1.msra.mxu0 0.0
          %2403 = vmatprep.subr.mxu0 0.0
          %2404 = vmatpush1.msra.mxu0 0.0
          %2405 = vmatprep.subr.mxu0 0.0
          %2406 = vmatpush1.msra.mxu0 0.0
          %2407 = vmatprep.subr.mxu0 0.0
          %2408 = vmatpush1.msra.mxu0 0.0
          %2409 = vmatprep.subr.mxu0 0.0
          %2410 = vmatpush1.msra.mxu0 0.0
          %2411 = vmatprep.subr.mxu0 0.0
          %2412 = vmatpush1.msra.mxu0 0.0
          %2413 = vmatprep.subr.mxu0 0.0
          %2414 = vmatpush1.msra.mxu0 0.0
          %2415 = vmatprep.subr.mxu0 0.0
          %2416 = vmatpush1.msra.mxu0 0.0
          %2417 = vmatprep.subr.mxu0 0.0
          %2418 = vmatpush1.msra.mxu0 0.0
          %2419 = vmatprep.subr.mxu0 0.0
          %2420 = vmatpush1.msra.mxu0 0.0
          %2421 = vmatprep.subr.mxu0 0.0
          %2422 = vmatpush1.msra.mxu0 0.0
          %2423 = vmatprep.subr.mxu0 0.0
          %2424 = vmatpush1.msra.mxu0 %v2313
          %2425 = vmatprep.subr.mxu0 0.0
          %2426 = vmatpush2.msra.mxu0 0.0
          %2427 = vmatprep.subr.mxu0 0.0
          %2428 = vmatpush2.msra.mxu0 0.0
          %2429 = vmatprep.subr.mxu0 0.0
          %2430 = vmatpush2.msra.mxu0 0.0
          %2431 = vmatprep.subr.mxu0 0.0
          %2432 = vmatpush2.msra.mxu0 0.0
          %2433 = vmatprep.subr.mxu0 0.0
          %2434 = vmatpush2.msra.mxu0 0.0
          %2435 = vmatprep.subr.mxu0 0.0
          %2436 = vmatpush2.msra.mxu0 0.0
          %2437 = vmatprep.subr.mxu0 0.0
          %2438 = vmatpush2.msra.mxu0 0.0
          %2439 = vmatprep.subr.mxu0 0.0
          %2440 = vmatpush2.msra.mxu0 0.0
          %2441 = vmatprep.subr.mxu0 0.0
          %2442 = vmatpush2.msra.mxu0 0.0
          %2443 = vmatprep.subr.mxu0 0.0
          %2444 = vmatpush2.msra.mxu0 0.0
          %2445 = vmatprep.subr.mxu0 0.0
          %2446 = vmatpush2.msra.mxu0 0.0
          %2447 = vmatprep.subr.mxu0 0.0
          %2448 = vmatpush2.msra.mxu0 0.0
          %2449 = vmatprep.subr.mxu0 0.0
          %2450 = vmatpush2.msra.mxu0 0.0
          %2451 = vmatprep.subr.mxu0 0.0
          %2452 = vmatpush2.msra.mxu0 0.0
          %2453 = vmatprep.subr.mxu0 0.0
          %2454 = vmatpush2.msra.mxu0 0.0
          %2455 = vmatprep.subr.mxu0 0.0
          %2456 = vmatpush2.msra.mxu0 0.0
          %2457 = vmatprep.mubr.f32.mxu0 0.0
          %2458 = vmatmul.mubr.f32.gmra.mxu0 %v2391
          %v2459 = vpop.f32.mrf.mxu0
          %v2460 = vadd.f32 %v2387, %v2459
          %v2461 = vpop.f32.mrf.mxu0
          %2462 = vdwg.mxu0
          %v2464 = vsel %vm2182, %v2311, 0
          %2466 = vmatprep.subr.mxu0 0.0
          %2467 = vmatpush1.msra.mxu0 0.0
          %2468 = vmatprep.subr.mxu0 0.0
          %2469 = vmatpush1.msra.mxu0 0.0
          %2470 = vmatprep.subr.mxu0 0.0
          %2471 = vmatpush1.msra.mxu0 0.0
          %2472 = vmatprep.subr.mxu0 0.0
          %2473 = vmatpush1.msra.mxu0 0.0
          %2474 = vmatprep.subr.mxu0 0.0
          %2475 = vmatpush1.msra.mxu0 0.0
          %2476 = vmatprep.subr.mxu0 0.0
          %2477 = vmatpush1.msra.mxu0 0.0
          %2478 = vmatprep.subr.mxu0 0.0
          %2479 = vmatpush1.msra.mxu0 0.0
          %2480 = vmatprep.subr.mxu0 0.0
          %2481 = vmatpush1.msra.mxu0 0.0
          %2482 = vmatprep.subr.mxu0 0.0
          %2483 = vmatpush1.msra.mxu0 0.0
          %2484 = vmatprep.subr.mxu0 0.0
          %2485 = vmatpush1.msra.mxu0 0.0
          %2486 = vmatprep.subr.mxu0 0.0
          %2487 = vmatpush1.msra.mxu0 0.0
          %2488 = vmatprep.subr.mxu0 0.0
          %2489 = vmatpush1.msra.mxu0 0.0
          %2490 = vmatprep.subr.mxu0 0.0
          %2491 = vmatpush1.msra.mxu0 0.0
          %2492 = vmatprep.subr.mxu0 0.0
          %2493 = vmatpush1.msra.mxu0 0.0
          %2494 = vmatprep.subr.mxu0 0.0
          %2495 = vmatpush1.msra.mxu0 0.0
          %2496 = vmatprep.subr.mxu0 0.0
          %2497 = vmatpush1.msra.mxu0 %v2315
          %2498 = vmatprep.subr.mxu0 0.0
          %2499 = vmatpush2.msra.mxu0 0.0
          %2500 = vmatprep.subr.mxu0 0.0
          %2501 = vmatpush2.msra.mxu0 0.0
          %2502 = vmatprep.subr.mxu0 0.0
          %2503 = vmatpush2.msra.mxu0 0.0
          %2504 = vmatprep.subr.mxu0 0.0
          %2505 = vmatpush2.msra.mxu0 0.0
          %2506 = vmatprep.subr.mxu0 0.0
          %2507 = vmatpush2.msra.mxu0 0.0
          %2508 = vmatprep.subr.mxu0 0.0
          %2509 = vmatpush2.msra.mxu0 0.0
          %2510 = vmatprep.subr.mxu0 0.0
          %2511 = vmatpush2.msra.mxu0 0.0
          %2512 = vmatprep.subr.mxu0 0.0
          %2513 = vmatpush2.msra.mxu0 0.0
          %2514 = vmatprep.subr.mxu0 0.0
          %2515 = vmatpush2.msra.mxu0 0.0
          %2516 = vmatprep.subr.mxu0 0.0
          %2517 = vmatpush2.msra.mxu0 0.0
          %2518 = vmatprep.subr.mxu0 0.0
          %2519 = vmatpush2.msra.mxu0 0.0
          %2520 = vmatprep.subr.mxu0 0.0
          %2521 = vmatpush2.msra.mxu0 0.0
          %2522 = vmatprep.subr.mxu0 0.0
          %2523 = vmatpush2.msra.mxu0 0.0
          %2524 = vmatprep.subr.mxu0 0.0
          %2525 = vmatpush2.msra.mxu0 0.0
          %2526 = vmatprep.subr.mxu0 0.0
          %2527 = vmatpush2.msra.mxu0 0.0
          %2528 = vmatprep.subr.mxu0 0.0
          %2529 = vmatpush2.msra.mxu0 0.0
          %2530 = vmatprep.mubr.f32.mxu0 0.0
          %2531 = vmatmul.mubr.f32.gmra.mxu0 %v2464
          %v2532 = vpop.f32.mrf.mxu0
          %v2533 = vadd.f32 0.0, %v2532
          %v2534 = vpop.f32.mrf.mxu0
          %2535 = vdwg.mxu0
          %v2536 = vadd.f32 %v2460, %v2533
          %v2538 = vsel %vm2182, %v2312, 0
          %2540 = vmatprep.subr.mxu0 0.0
          %2541 = vmatpush1.msra.mxu0 0.0
          %2542 = vmatprep.subr.mxu0 0.0
          %2543 = vmatpush1.msra.mxu0 0.0
          %2544 = vmatprep.subr.mxu0 0.0
          %2545 = vmatpush1.msra.mxu0 0.0
          %2546 = vmatprep.subr.mxu0 0.0
          %2547 = vmatpush1.msra.mxu0 0.0
          %2548 = vmatprep.subr.mxu0 0.0
          %2549 = vmatpush1.msra.mxu0 0.0
          %2550 = vmatprep.subr.mxu0 0.0
          %2551 = vmatpush1.msra.mxu0 0.0
          %2552 = vmatprep.subr.mxu0 0.0
          %2553 = vmatpush1.msra.mxu0 0.0
          %2554 = vmatprep.subr.mxu0 0.0
          %2555 = vmatpush1.msra.mxu0 0.0
          %2556 = vmatprep.subr.mxu0 0.0
          %2557 = vmatpush1.msra.mxu0 0.0
          %2558 = vmatprep.subr.mxu0 0.0
          %2559 = vmatpush1.msra.mxu0 0.0
          %2560 = vmatprep.subr.mxu0 0.0
          %2561 = vmatpush1.msra.mxu0 0.0
          %2562 = vmatprep.subr.mxu0 0.0
          %2563 = vmatpush1.msra.mxu0 0.0
          %2564 = vmatprep.subr.mxu0 0.0
          %2565 = vmatpush1.msra.mxu0 0.0
          %2566 = vmatprep.subr.mxu0 0.0
          %2567 = vmatpush1.msra.mxu0 0.0
          %2568 = vmatprep.subr.mxu0 0.0
          %2569 = vmatpush1.msra.mxu0 0.0
          %2570 = vmatprep.subr.mxu0 0.0
          %2571 = vmatpush1.msra.mxu0 %v2316
          %2572 = vmatprep.subr.mxu0 0.0
          %2573 = vmatpush2.msra.mxu0 0.0
          %2574 = vmatprep.subr.mxu0 0.0
          %2575 = vmatpush2.msra.mxu0 0.0
          %2576 = vmatprep.subr.mxu0 0.0
          %2577 = vmatpush2.msra.mxu0 0.0
          %2578 = vmatprep.subr.mxu0 0.0
          %2579 = vmatpush2.msra.mxu0 0.0
          %2580 = vmatprep.subr.mxu0 0.0
          %2581 = vmatpush2.msra.mxu0 0.0
          %2582 = vmatprep.subr.mxu0 0.0
          %2583 = vmatpush2.msra.mxu0 0.0
          %2584 = vmatprep.subr.mxu0 0.0
          %2585 = vmatpush2.msra.mxu0 0.0
          %2586 = vmatprep.subr.mxu0 0.0
          %2587 = vmatpush2.msra.mxu0 0.0
          %2588 = vmatprep.subr.mxu0 0.0
          %2589 = vmatpush2.msra.mxu0 0.0
          %2590 = vmatprep.subr.mxu0 0.0
          %2591 = vmatpush2.msra.mxu0 0.0
          %2592 = vmatprep.subr.mxu0 0.0
          %2593 = vmatpush2.msra.mxu0 0.0
          %2594 = vmatprep.subr.mxu0 0.0
          %2595 = vmatpush2.msra.mxu0 0.0
          %2596 = vmatprep.subr.mxu0 0.0
          %2597 = vmatpush2.msra.mxu0 0.0
          %2598 = vmatprep.subr.mxu0 0.0
          %2599 = vmatpush2.msra.mxu0 0.0
          %2600 = vmatprep.subr.mxu0 0.0
          %2601 = vmatpush2.msra.mxu0 0.0
          %2602 = vmatprep.subr.mxu0 0.0
          %2603 = vmatpush2.msra.mxu0 0.0
          %2604 = vmatprep.mubr.f32.mxu0 0.0
          %2605 = vmatmul.mubr.f32.gmra.mxu0 %v2538
          %v2606 = vpop.f32.mrf.mxu0
          %v2607 = vadd.f32 0.0, %v2606
          %v2608 = vpop.f32.mrf.mxu0
          %2609 = vdwg.mxu0
          %v2610 = vadd.f32 %v2536, %v2607
          %v2611 = vld [vmem:[%s11] sm:$0x1]
          %v2613 = vlaneseq
          %v2614 = vshrl.u32 %v2613, 7
          %v2615 = vsub.s32 0, %v2614
          %v2616 = vrot.slane %v2611, %v2615
          %v2618 = vadd.f32 %v2610, %v2616
          %vm2619 = vcmask 261120
          %2620 = vst.msk [vmem:[%s560] sm:$0xff] %vm2619, %v2618
        $region156: #{tpu_custom_call.1} parent=135 // pred_fallthru
          _
        %s2621 = sand.u32 %s325, 1
        %s2622 = scalar_lea.sflag [#allocation6], %s2621
        %s2623 = sand.u32 %s325, 1
        %s2624 = smul.addr %s2623, 8
        %s2625 = scalar_lea.vmem [#allocation5], %s2624
        // Predicated region
        $region157: #{tpu_custom_call.1} parent=135 // pred_check
          %p2626 = pneg %p335
        $region158: #{tpu_custom_call.1} parent=135 // pred_check_branch
          %2628 = sbr.rel (%p2626) target = $region160
        $region159: #{tpu_custom_call.1} parent=135 // pred_region
          %s2630 = ssub.s32 128, 128
          %2631 = vsyncadd %s2622, %s2630
          %s2632 = smul.addr %s31, 2
          %s2633 = sadd.s32 %s32, %s2632
          %s2634 = smul.addr %s2633, 128
          %s2635 = scalar_lea.hbm %s12, %s2634
          %s2637 = sshll.u32 %s2625, 4
          %s2638 = int_to_ptr.vmem [resolvable:$true] %s2637
          %2640 = dma.vmem_to_hbm [thread:$0]  %s2638, 128, %s2635, %s2622
        $region160: #{tpu_custom_call.1} parent=135 // pred_fallthru
          _
      $region136: #{tpu_custom_call.1} parent=5 // pred_fallthru
        _
      %p2641 = scmp.le.s32.totalorder 2, %s21
      // Predicated region
      $region161: #{tpu_custom_call.1} parent=5 // pred_check
        %p2642 = pneg %p2641
      $region162: #{tpu_custom_call.1} parent=5 // pred_check_branch
        %2644 = sbr.rel (%p2642) target = $region164
      $region163: #{tpu_custom_call.1} parent=5 // pred_region
        %s2645 = ssub.s32 %s21, 2
        // Predicated region
        $region165: #{tpu_custom_call.1} parent=163 // pred_check
          %p2646 = pneg %p341
        $region166: #{tpu_custom_call.1} parent=163 // pred_check_branch
          %2648 = sbr.rel (%p2646) target = $region168
        $region167: #{tpu_custom_call.1} parent=163 // pred_region
          %s2649 = sand.u32 %s326, 1
          %s2650 = scalar_lea.sflag [#allocation6], %s2649
          %s2651 = sand.u32 %s326, 1
          %s2652 = smul.addr %s2651, 8
          %s2653 = scalar_lea.vmem [#allocation5], %s2652
          %2654 = dma.done %s2650, 128
        $region168: #{tpu_custom_call.1} parent=163 // pred_fallthru
          _
      $region164: #{tpu_custom_call.1} parent=5 // pred_fallthru
        _
    $region6: #{tpu_custom_call.1} parent=1 // loop_footer
      %s25 = sadd.s32 1, %s21
    $region7: #{tpu_custom_call.1} parent=1 // loop_footer_branch
      %20 = sbr.rel target = $region3
    $region8: #{tpu_custom_call.1} parent=1 // loop_exit
      _
    %2655 = vsyncpa [#allocation6], 1
    %s2656 = scalar_lea.sflag [#allocation6], 1
    %2657 = vsyncpa %s2656, 1

</llo_original>
